<compile_context>
chip_gen: v7x
topology: tpu7x:2x2x1
jax: 0.10.0
libtpu: 0.0.40
codegen_flags: <defaults>
</compile_context>

<pallas_src>
import jax
import jax.numpy as jnp
from jax.experimental import pallas as pl
from jax.experimental.pallas import tpu as pltpu


def _round_up(x, m):
    return ((x + m - 1) // m) * m


def gcmc_kernel(xs_ref, wcomb_ref, a_ref, ci_ref, bfc_ref, o_ref):
    """One grid step = (dst tile i, rating r, src tile k).

    xs_ref   : (TK, D)        cj-prescaled source features (f32)
    wcomb_ref: (1, D, OUTP)   folded W_r @ Wfc_r (f32, lane-padded)
    a_ref    : (1, TM, TK)    adjacency tile (bf16, exact 0/1)
    ci_ref   : (TM, 1)        destination normalizers
    bfc_ref  : (1, OUTP)      FC bias (lane-padded)
    o_ref    : (TM, OUTP)     output block, VMEM-resident across (r, k)
    """
    r = pl.program_id(1)
    k = pl.program_id(2)

    @pl.when(jnp.logical_and(r == 0, k == 0))
    def _init():
        o_ref[...] = jnp.zeros_like(o_ref)

    # Fused projection: (cj*X) tile @ (W_r @ Wfc_r)  -> [TK, OUTP]
    g = jnp.dot(xs_ref[...], wcomb_ref[0], preferred_element_type=jnp.float32)
    # Dense message passing for this (dst, rating, src) block; bf16 MXU path,
    # f32 accumulation.
    o_ref[...] += jnp.dot(a_ref[0], g.astype(jnp.bfloat16),
                          preferred_element_type=jnp.float32)

    @pl.when(jnp.logical_and(r == pl.num_programs(1) - 1,
                             k == pl.num_programs(2) - 1))
    def _finalize():
        # ci is a per-dst-row scale, so it commutes with the FC; bias added once.
        # agg_act / dropout / out_act are identities for the default config.
        o_ref[...] = o_ref[...] * ci_ref[...] + bfc_ref[...]


def gcmc_one_node_type(x_src, w_stack, a_stack, cj_src, ci_dst, wfc, bfc,
                       *, tm=512, tk=1024):
    """Fused GCMC layer for one destination node type.

    x_src  : [N_src, D_src]        source-node input features
    w_stack: [R, D_src, msg_per]   per-rating GCMCGraphConv weights
    a_stack: [R, N_dst, N_src]     per-rating dense adjacency (dst x src)
    cj_src : [N_src, 1]            source normalizers
    ci_dst : [N_dst, 1]            destination normalizers
    wfc    : [R*msg_per, out]      ufc/ifc weight, stored (in, out)
    bfc    : [out]                 ufc/ifc bias
    returns: [N_dst, out]
    """
    R, d_src, msg_per = w_stack.shape
    n_dst, n_src = a_stack.shape[1], a_stack.shape[2]
    out_units = wfc.shape[-1]

    # ---- algebraic folding: Wcomb_r = W_r @ Wfc_r ;  xs = cj * X ----
    wfc_r = wfc.reshape(R, msg_per, out_units)
    wcomb = jnp.einsum('rdm,rmo->rdo', w_stack, wfc_r)      # [R, D, out]
    xs = x_src * cj_src

    # ---- lane-dense padding of the output / FC dims ----
    out_pad = _round_up(out_units, 128)
    wcomb = jnp.pad(wcomb, ((0, 0), (0, 0), (0, out_pad - out_units)))
    bfc_p = jnp.pad(bfc, (0, out_pad - out_units)).reshape(1, out_pad)

    # ---- tile + pad N_dst / N_src (blocks must be (8,128)-aligned) ----
    tm = min(tm, _round_up(n_dst, 8))
    tk = min(tk, _round_up(n_src, 128))
    n_dst_p = _round_up(n_dst, tm)
    n_src_p = _round_up(n_src, tk)

    xs = jnp.pad(xs, ((0, n_src_p - n_src), (0, 0)))
    ci = jnp.pad(ci_dst, ((0, n_dst_p - n_dst), (0, 0)))
    a = jnp.pad(a_stack, ((0, 0), (0, n_dst_p - n_dst), (0, n_src_p - n_src)))
    a = a.astype(jnp.bfloat16)            # exact for 0/1, halves A HBM traffic

    grid = (n_dst_p // tm, R, n_src_p // tk)

    out = pl.pallas_call(
        gcmc_kernel,
        out_shape=jax.ShapeDtypeStruct((n_dst_p, out_pad), jnp.float32),
        grid_spec=pltpu.PrefetchScalarGridSpec(
            num_scalar_prefetch=0,
            grid=grid,
            in_specs=[
                pl.BlockSpec((tk, d_src), lambda i, r, k: (k, 0)),
                pl.BlockSpec((1, d_src, out_pad), lambda i, r, k: (r, 0, 0)),
                pl.BlockSpec((1, tm, tk), lambda i, r, k: (r, i, k)),
                pl.BlockSpec((tm, 1), lambda i, r, k: (i, 0)),
                pl.BlockSpec((1, out_pad), lambda i, r, k: (0, 0)),
            ],
            out_specs=pl.BlockSpec((tm, out_pad), lambda i, r, k: (i, 0)),
        ),
        compiler_params=pltpu.CompilerParams(
            dimension_semantics=("parallel", "arbitrary", "arbitrary"),
            vmem_limit_bytes=48 * 1024 * 1024),
    )(xs, wcomb, a, ci, bfc_p)

    return out[:n_dst, :out_units]


def gcmc_layer_forward(params, ufeat, ifeat, adj_ui, adj_iu, cj_u, ci_u,
                       cj_i, ci_i):
    """Full GCMCLayer.forward -> (user_out, item_out). The two pallas_calls are
    data-independent so XLA is free to overlap them (one per core on v7x)."""
    # item nodes receive from users over 'rating' edges (adj_ui: [R, Ni, Nu]).
    item_out = gcmc_one_node_type(
        ufeat, params["W_user"], adj_ui, cj_u, ci_i,
        params["ifc_w"], params["ifc_b"])
    # user nodes receive from items over 'rev-rating' edges (adj_iu: [R, Nu, Ni]).
    user_out = gcmc_one_node_type(
        ifeat, params["W_item"], adj_iu, cj_i, ci_u,
        params["ufc_w"], params["ufc_b"])
    return user_out, item_out


# ------------------------- reference (pure JAX, f32) -------------------------
def _ref_one(x_src, w_stack, a_stack, cj_src, ci_dst, wfc, bfc):
    ys = []
    for r in range(w_stack.shape[0]):
        h = (x_src @ w_stack[r]) * cj_src
        y = (a_stack[r] @ h) * ci_dst
        ys.append(y)
    flat = jnp.concatenate(ys, axis=1)        # stack over ratings + view(N,-1)
    return flat @ wfc + bfc


def _xavier(key, shape):
    fan_in, fan_out = shape[-2], shape[-1]
    bound = (6.0 / (fan_in + fan_out)) ** 0.5
    return jax.random.uniform(key, shape, jnp.float32, -bound, bound)


if __name__ == "__main__":
    # Small synthetic config (share_user_item_param=False path).
    R = 4                 # len(rating_vals)
    Nu, Ni = 48, 40       # num user / item nodes
    user_in, movie_in = 16, 24
    msg_units, out_units = 32, 16
    msg_per = msg_units // R          # agg == 'stack'

    key = jax.random.PRNGKey(0)
    ks = jax.random.split(key, 12)

    params = {
        # GCMCGraphConv weights: rating edges consume user feats,
        # rev-rating edges consume item feats.
        "W_user": _xavier(ks[0], (R, user_in, msg_per)),
        "W_item": _xavier(ks[1], (R, movie_in, msg_per)),
        # ufc / ifc: nn.Linear(msg_units, out_units), stored as (in, out).
        "ufc_w": _xavier(ks[2], (msg_units, out_units)),
        "ufc_b": jax.random.uniform(ks[3], (out_units,), jnp.float32,
                                    -1.0 / msg_units ** 0.5, 1.0 / msg_units ** 0.5),
        "ifc_w": _xavier(ks[4], (msg_units, out_units)),
        "ifc_b": jax.random.uniform(ks[5], (out_units,), jnp.float32,
                                    -1.0 / msg_units ** 0.5, 1.0 / msg_units ** 0.5),
    }

    ufeat = jax.random.normal(ks[6], (Nu, user_in), jnp.float32)
    ifeat = jax.random.normal(ks[7], (Ni, movie_in), jnp.float32)

    # Dense per-rating adjacencies (dst x src) and GCMC normalizers ci/cj.
    adj_ui = jax.random.bernoulli(ks[8], 0.2, (R, Ni, Nu)).astype(jnp.float32)
    adj_iu = jnp.transpose(adj_ui, (0, 2, 1))          # rev-rating edges
    deg_u = jnp.maximum(adj_iu.sum(axis=(0, 2)), 1.0)  # user degree over all ratings
    deg_i = jnp.maximum(adj_ui.sum(axis=(0, 2)), 1.0)  # item degree
    cj_u = (1.0 / jnp.sqrt(deg_u)).reshape(Nu, 1)
    ci_u = cj_u
    cj_i = (1.0 / jnp.sqrt(deg_i)).reshape(Ni, 1)
    ci_i = cj_i

    user_out, item_out = jax.jit(gcmc_layer_forward)(
        params, ufeat, ifeat, adj_ui, adj_iu, cj_u, ci_u, cj_i, ci_i)
    jax.block_until_ready((user_out, item_out))

    # Verify against the pure-JAX f32 reference of the PyTorch semantics.
    # Tolerance relaxed slightly vs v1 because the message-passing matmul runs
    # on the bf16 MXU path (A is exact in bf16; only G is rounded).
    item_ref = _ref_one(ufeat, params["W_user"], adj_ui, cj_u, ci_i,
                        params["ifc_w"], params["ifc_b"])
    user_ref = _ref_one(ifeat, params["W_item"], adj_iu, cj_i, ci_u,
                        params["ufc_w"], params["ufc_b"])
    assert user_out.shape == (Nu, out_units) and item_out.shape == (Ni, out_units)
    assert jnp.allclose(user_out, user_ref, atol=3e-2, rtol=3e-2)
    assert jnp.allclose(item_out, item_ref, atol=3e-2, rtol=3e-2)

    print("KERNEL_OK")
</pallas_src>

<mosaic_0001>
module attributes {stable_mosaic.version = 11 : i64} {
  func.func @gcmc_kernel(%arg0: i32, %arg1: i32, %arg2: i32, %arg3: memref<128x24xf32, #tpu.memory_space<vmem>>, %arg4: memref<1x24x128xf32, #tpu.memory_space<vmem>>, %arg5: memref<1x48x128xbf16, #tpu.memory_space<vmem>>, %arg6: memref<48x1xf32, #tpu.memory_space<vmem>>, %arg7: memref<1x128xf32, #tpu.memory_space<vmem>>, %arg8: memref<48x128xf32, #tpu.memory_space<vmem>>) attributes {dimension_semantics = [#tpu.dimension_semantics<parallel>, #tpu.dimension_semantics<arbitrary>, #tpu.dimension_semantics<arbitrary>], iteration_bounds = array<i64: 1, 4, 1>, scalar_prefetch = 0 : i64, scratch_operands = 0 : i64, tpu.core_type = #tpu.core_type<tc>, window_params = [{transform_indices = @transform_0, window_bounds = array<i64: 128, 24>}, {transform_indices = @transform_1, window_bounds = array<i64: 1, 24, 128>}, {transform_indices = @transform_2, window_bounds = array<i64: 1, 48, 128>}, {transform_indices = @transform_3, window_bounds = array<i64: 48, 1>}, {pipeline_mode = #tpu.pipeline_mode<synchronous>, transform_indices = @transform_4, window_bounds = array<i64: 1, 128>}, {transform_indices = @transform_5, window_bounds = array<i64: 48, 128>}]} {
    %c0_i32 = arith.constant 0 : i32
    %0 = arith.cmpi eq, %arg1, %c0_i32 : i32
    %c0_i32_0 = arith.constant 0 : i32
    %1 = arith.cmpi eq, %arg2, %c0_i32_0 : i32
    %2 = arith.andi %0, %1 : i1
    %3 = arith.extui %2 : i1 to i32
    %c0_i32_1 = arith.constant 0 : i32
    %4 = arith.cmpi ne, %3, %c0_i32_1 : i32
    scf.if %4 {
      %cst_16 = arith.constant 0.000000e+00 : f32
      %21 = vector.broadcast %cst_16 : f32 to vector<48x128xf32>
      %c0_17 = arith.constant 0 : index
      %c0_18 = arith.constant 0 : index
      %22 = vector.load %arg8[%c0_17, %c0_18] : memref<48x128xf32, #tpu.memory_space<vmem>>, vector<48x128xf32>
      tpu.vector_store %arg8[%c0_17, %c0_18], %21 {strides = array<i32>} : memref<48x128xf32, #tpu.memory_space<vmem>>, vector<48x128xf32>,
    } else {
    }
    %c0 = arith.constant 0 : index
    %c0_2 = arith.constant 0 : index
    %5 = vector.load %arg3[%c0, %c0_2] : memref<128x24xf32, #tpu.memory_space<vmem>>, vector<128x24xf32>
    %c0_3 = arith.constant 0 : index
    %c0_4 = arith.constant 0 : index
    %c0_5 = arith.constant 0 : index
    %6 = vector.load %arg4[%c0_3, %c0_4, %c0_5] : memref<1x24x128xf32, #tpu.memory_space<vmem>>, vector<1x24x128xf32>
    %7 = vector.shape_cast %6 : vector<1x24x128xf32> to vector<24x128xf32>
    %cst = arith.constant dense<0.000000e+00> : vector<128x128xf32>
    %8 = tpu.matmul %5, %7, %cst {dimension_numbers = #tpu.dot_dimension_numbers<[1], [0], [0], [1], [0, 0, 1, 1], [], []>} : vector<128x24xf32>, vector<24x128xf32>, vector<128x128xf32> -> vector<128x128xf32>
    %c0_6 = arith.constant 0 : index
    %c0_7 = arith.constant 0 : index
    %9 = vector.load %arg8[%c0_6, %c0_7] : memref<48x128xf32, #tpu.memory_space<vmem>>, vector<48x128xf32>
    %c0_8 = arith.constant 0 : index
    %c0_9 = arith.constant 0 : index
    %c0_10 = arith.constant 0 : index
    %10 = vector.load %arg5[%c0_8, %c0_9, %c0_10] : memref<1x48x128xbf16, #tpu.memory_space<vmem>>, vector<1x48x128xbf16>
    %11 = vector.shape_cast %10 : vector<1x48x128xbf16> to vector<48x128xbf16>
    %12 = arith.truncf %8 : vector<128x128xf32> to vector<128x128xbf16>
    %cst_11 = arith.constant dense<0.000000e+00> : vector<48x128xf32>
    %13 = tpu.matmul %11, %12, %cst_11 {dimension_numbers = #tpu.dot_dimension_numbers<[1], [0], [0], [1], [0, 0, 1, 1], [], []>} : vector<48x128xbf16>, vector<128x128xbf16>, vector<48x128xf32> -> vector<48x128xf32>
    %14 = arith.addf %9, %13 : vector<48x128xf32>
    %c0_12 = arith.constant 0 : index
    %c0_13 = arith.constant 0 : index
    %15 = vector.load %arg8[%c0_12, %c0_13] : memref<48x128xf32, #tpu.memory_space<vmem>>, vector<48x128xf32>
    tpu.vector_store %arg8[%c0_12, %c0_13], %14 {strides = array<i32>} : memref<48x128xf32, #tpu.memory_space<vmem>>, vector<48x128xf32>,
    %c3_i32 = arith.constant 3 : i32
    %16 = arith.cmpi eq, %arg1, %c3_i32 : i32
    %c0_i32_14 = arith.constant 0 : i32
    %17 = arith.cmpi eq, %arg2, %c0_i32_14 : i32
    %18 = arith.andi %16, %17 : i1
    %19 = arith.extui %18 : i1 to i32
    %c0_i32_15 = arith.constant 0 : i32
    %20 = arith.cmpi ne, %19, %c0_i32_15 : i32
    scf.if %20 {
      %c0_16 = arith.constant 0 : index
      %c0_17 = arith.constant 0 : index
      %21 = vector.load %arg8[%c0_16, %c0_17] : memref<48x128xf32, #tpu.memory_space<vmem>>, vector<48x128xf32>
      %c0_18 = arith.constant 0 : index
      %c0_19 = arith.constant 0 : index
      %22 = vector.load %arg6[%c0_18, %c0_19] : memref<48x1xf32, #tpu.memory_space<vmem>>, vector<48x1xf32>
      %23 = vector.broadcast %22 : vector<48x1xf32> to vector<48x128xf32>
      %24 = arith.mulf %21, %23 : vector<48x128xf32>
      %c0_20 = arith.constant 0 : index
      %c0_21 = arith.constant 0 : index
      %25 = vector.load %arg7[%c0_20, %c0_21] : memref<1x128xf32, #tpu.memory_space<vmem>>, vector<1x128xf32>
      %26 = vector.broadcast %25 : vector<1x128xf32> to vector<48x128xf32>
      %27 = arith.addf %24, %26 : vector<48x128xf32>
      %c0_22 = arith.constant 0 : index
      %c0_23 = arith.constant 0 : index
      %28 = vector.load %arg8[%c0_22, %c0_23] : memref<48x128xf32, #tpu.memory_space<vmem>>, vector<48x128xf32>
      tpu.vector_store %arg8[%c0_22, %c0_23], %27 {strides = array<i32>} : memref<48x128xf32, #tpu.memory_space<vmem>>, vector<48x128xf32>,
    } else {
    }
    return
  }
  func.func @transform_0(%arg0: i32, %arg1: i32, %arg2: i32) -> (i32, i32) {
    %c0_i32 = arith.constant 0 : i32
    %c0_i32_0 = arith.constant 0 : i32
    return %arg2, %c0_i32 : i32, i32
  }
  func.func @transform_1(%arg0: i32, %arg1: i32, %arg2: i32) -> (i32, i32, i32) {
    %c0_i32 = arith.constant 0 : i32
    %c0_i32_0 = arith.constant 0 : i32
    %c0_i32_1 = arith.constant 0 : i32
    return %arg1, %c0_i32, %c0_i32_0 : i32, i32, i32
  }
  func.func @transform_2(%arg0: i32, %arg1: i32, %arg2: i32) -> (i32, i32, i32) {
    %c0_i32 = arith.constant 0 : i32
    return %arg1, %arg0, %arg2 : i32, i32, i32
  }
  func.func @transform_3(%arg0: i32, %arg1: i32, %arg2: i32) -> (i32, i32) {
    %c0_i32 = arith.constant 0 : i32
    %c0_i32_0 = arith.constant 0 : i32
    return %arg0, %c0_i32 : i32, i32
  }
  func.func @transform_4(%arg0: i32, %arg1: i32, %arg2: i32) -> (i32, i32) {
    %c0_i32 = arith.constant 0 : i32
    %c0_i32_0 = arith.constant 0 : i32
    %c0_i32_1 = arith.constant 0 : i32
    return %c0_i32, %c0_i32_0 : i32, i32
  }
  func.func @transform_5(%arg0: i32, %arg1: i32, %arg2: i32) -> (i32, i32) {
    %c0_i32 = arith.constant 0 : i32
    %c0_i32_0 = arith.constant 0 : i32
    return %arg0, %c0_i32 : i32, i32
  }
}

module attributes {stable_mosaic.version = 11 : i64} {
  func.func @gcmc_kernel(%arg0: i32, %arg1: i32, %arg2: i32, %arg3: memref<128x16xf32, #tpu.memory_space<vmem>>, %arg4: memref<1x16x128xf32, #tpu.memory_space<vmem>>, %arg5: memref<1x40x128xbf16, #tpu.memory_space<vmem>>, %arg6: memref<40x1xf32, #tpu.memory_space<vmem>>, %arg7: memref<1x128xf32, #tpu.memory_space<vmem>>, %arg8: memref<40x128xf32, #tpu.memory_space<vmem>>) attributes {dimension_semantics = [#tpu.dimension_semantics<parallel>, #tpu.dimension_semantics<arbitrary>, #tpu.dimension_semantics<arbitrary>], iteration_bounds = array<i64: 1, 4, 1>, scalar_prefetch = 0 : i64, scratch_operands = 0 : i64, tpu.core_type = #tpu.core_type<tc>, window_params = [{transform_indices = @transform_0, window_bounds = array<i64: 128, 16>}, {transform_indices = @transform_1, window_bounds = array<i64: 1, 16, 128>}, {transform_indices = @transform_2, window_bounds = array<i64: 1, 40, 128>}, {transform_indices = @transform_3, window_bounds = array<i64: 40, 1>}, {pipeline_mode = #tpu.pipeline_mode<synchronous>, transform_indices = @transform_4, window_bounds = array<i64: 1, 128>}, {transform_indices = @transform_5, window_bounds = array<i64: 40, 128>}]} {
    %c0_i32 = arith.constant 0 : i32
    %0 = arith.cmpi eq, %arg1, %c0_i32 : i32
    %c0_i32_0 = arith.constant 0 : i32
    %1 = arith.cmpi eq, %arg2, %c0_i32_0 : i32
    %2 = arith.andi %0, %1 : i1
    %3 = arith.extui %2 : i1 to i32
    %c0_i32_1 = arith.constant 0 : i32
    %4 = arith.cmpi ne, %3, %c0_i32_1 : i32
    scf.if %4 {
      %cst_16 = arith.constant 0.000000e+00 : f32
      %21 = vector.broadcast %cst_16 : f32 to vector<40x128xf32>
      %c0_17 = arith.constant 0 : index
      %c0_18 = arith.constant 0 : index
      %22 = vector.load %arg8[%c0_17, %c0_18] : memref<40x128xf32, #tpu.memory_space<vmem>>, vector<40x128xf32>
      tpu.vector_store %arg8[%c0_17, %c0_18], %21 {strides = array<i32>} : memref<40x128xf32, #tpu.memory_space<vmem>>, vector<40x128xf32>,
    } else {
    }
    %c0 = arith.constant 0 : index
    %c0_2 = arith.constant 0 : index
    %5 = vector.load %arg3[%c0, %c0_2] : memref<128x16xf32, #tpu.memory_space<vmem>>, vector<128x16xf32>
    %c0_3 = arith.constant 0 : index
    %c0_4 = arith.constant 0 : index
    %c0_5 = arith.constant 0 : index
    %6 = vector.load %arg4[%c0_3, %c0_4, %c0_5] : memref<1x16x128xf32, #tpu.memory_space<vmem>>, vector<1x16x128xf32>
    %7 = vector.shape_cast %6 : vector<1x16x128xf32> to vector<16x128xf32>
    %cst = arith.constant dense<0.000000e+00> : vector<128x128xf32>
    %8 = tpu.matmul %5, %7, %cst {dimension_numbers = #tpu.dot_dimension_numbers<[1], [0], [0], [1], [0, 0, 1, 1], [], []>} : vector<128x16xf32>, vector<16x128xf32>, vector<128x128xf32> -> vector<128x128xf32>
    %c0_6 = arith.constant 0 : index
    %c0_7 = arith.constant 0 : index
    %9 = vector.load %arg8[%c0_6, %c0_7] : memref<40x128xf32, #tpu.memory_space<vmem>>, vector<40x128xf32>
    %c0_8 = arith.constant 0 : index
    %c0_9 = arith.constant 0 : index
    %c0_10 = arith.constant 0 : index
    %10 = vector.load %arg5[%c0_8, %c0_9, %c0_10] : memref<1x40x128xbf16, #tpu.memory_space<vmem>>, vector<1x40x128xbf16>
    %11 = vector.shape_cast %10 : vector<1x40x128xbf16> to vector<40x128xbf16>
    %12 = arith.truncf %8 : vector<128x128xf32> to vector<128x128xbf16>
    %cst_11 = arith.constant dense<0.000000e+00> : vector<40x128xf32>
    %13 = tpu.matmul %11, %12, %cst_11 {dimension_numbers = #tpu.dot_dimension_numbers<[1], [0], [0], [1], [0, 0, 1, 1], [], []>} : vector<40x128xbf16>, vector<128x128xbf16>, vector<40x128xf32> -> vector<40x128xf32>
    %14 = arith.addf %9, %13 : vector<40x128xf32>
    %c0_12 = arith.constant 0 : index
    %c0_13 = arith.constant 0 : index
    %15 = vector.load %arg8[%c0_12, %c0_13] : memref<40x128xf32, #tpu.memory_space<vmem>>, vector<40x128xf32>
    tpu.vector_store %arg8[%c0_12, %c0_13], %14 {strides = array<i32>} : memref<40x128xf32, #tpu.memory_space<vmem>>, vector<40x128xf32>,
    %c3_i32 = arith.constant 3 : i32
    %16 = arith.cmpi eq, %arg1, %c3_i32 : i32
    %c0_i32_14 = arith.constant 0 : i32
    %17 = arith.cmpi eq, %arg2, %c0_i32_14 : i32
    %18 = arith.andi %16, %17 : i1
    %19 = arith.extui %18 : i1 to i32
    %c0_i32_15 = arith.constant 0 : i32
    %20 = arith.cmpi ne, %19, %c0_i32_15 : i32
    scf.if %20 {
      %c0_16 = arith.constant 0 : index
      %c0_17 = arith.constant 0 : index
      %21 = vector.load %arg8[%c0_16, %c0_17] : memref<40x128xf32, #tpu.memory_space<vmem>>, vector<40x128xf32>
      %c0_18 = arith.constant 0 : index
      %c0_19 = arith.constant 0 : index
      %22 = vector.load %arg6[%c0_18, %c0_19] : memref<40x1xf32, #tpu.memory_space<vmem>>, vector<40x1xf32>
      %23 = vector.broadcast %22 : vector<40x1xf32> to vector<40x128xf32>
      %24 = arith.mulf %21, %23 : vector<40x128xf32>
      %c0_20 = arith.constant 0 : index
      %c0_21 = arith.constant 0 : index
      %25 = vector.load %arg7[%c0_20, %c0_21] : memref<1x128xf32, #tpu.memory_space<vmem>>, vector<1x128xf32>
      %26 = vector.broadcast %25 : vector<1x128xf32> to vector<40x128xf32>
      %27 = arith.addf %24, %26 : vector<40x128xf32>
      %c0_22 = arith.constant 0 : index
      %c0_23 = arith.constant 0 : index
      %28 = vector.load %arg8[%c0_22, %c0_23] : memref<40x128xf32, #tpu.memory_space<vmem>>, vector<40x128xf32>
      tpu.vector_store %arg8[%c0_22, %c0_23], %27 {strides = array<i32>} : memref<40x128xf32, #tpu.memory_space<vmem>>, vector<40x128xf32>,
    } else {
    }
    return
  }
  func.func @transform_0(%arg0: i32, %arg1: i32, %arg2: i32) -> (i32, i32) {
    %c0_i32 = arith.constant 0 : i32
    %c0_i32_0 = arith.constant 0 : i32
    return %arg2, %c0_i32 : i32, i32
  }
  func.func @transform_1(%arg0: i32, %arg1: i32, %arg2: i32) -> (i32, i32, i32) {
    %c0_i32 = arith.constant 0 : i32
    %c0_i32_0 = arith.constant 0 : i32
    %c0_i32_1 = arith.constant 0 : i32
    return %arg1, %c0_i32, %c0_i32_0 : i32, i32, i32
  }
  func.func @transform_2(%arg0: i32, %arg1: i32, %arg2: i32) -> (i32, i32, i32) {
    %c0_i32 = arith.constant 0 : i32
    return %arg1, %arg0, %arg2 : i32, i32, i32
  }
  func.func @transform_3(%arg0: i32, %arg1: i32, %arg2: i32) -> (i32, i32) {
    %c0_i32 = arith.constant 0 : i32
    %c0_i32_0 = arith.constant 0 : i32
    return %arg0, %c0_i32 : i32, i32
  }
  func.func @transform_4(%arg0: i32, %arg1: i32, %arg2: i32) -> (i32, i32) {
    %c0_i32 = arith.constant 0 : i32
    %c0_i32_0 = arith.constant 0 : i32
    %c0_i32_1 = arith.constant 0 : i32
    return %c0_i32, %c0_i32_0 : i32, i32
  }
  func.func @transform_5(%arg0: i32, %arg1: i32, %arg2: i32) -> (i32, i32) {
    %c0_i32 = arith.constant 0 : i32
    %c0_i32_0 = arith.constant 0 : i32
    return %arg0, %c0_i32 : i32, i32
  }
}

</mosaic_0001>

<llo_original>
// kernel: gcmc_layer_forward.2
$region0: #{gcmc_layer_forward.2}
  #allocation0 [shape = 'u32[]', space=smem, size = 0x4, offset = 0x4, fixed_abs, tag = 'smem constant byte address 0x4 - core index']
  #allocation1 [shape = 'u32[144,128]{1,0:T(1,128)}', space=vmem, size = 0x12000, scoped, tag = 'internal scratch']
  %s0 = inlined_call_operand.vmem [shape: f32[128,16], index: 0, kind: input, shape index: {}]
  %s1 = inlined_call_operand.vmem [shape: f32[4,16,128], index: 1, kind: input, shape index: {}]
  %s2 = inlined_call_operand.vmem [shape: bf16[4,40,128], index: 2, kind: input, shape index: {}]
  %s3 = inlined_call_operand.vmem [shape: f32[40,1], index: 3, kind: input, shape index: {}]
  %s4 = inlined_call_operand.vmem [shape: f32[1,128], index: 4, kind: input, shape index: {}]
  %s5 = inlined_call_operand.vmem [shape: f32[40,128], index: 5, kind: output, shape index: {}]
  %s6 = sld [smem:[#allocation0]]
  $region61: #{gcmc_layer_forward.2} parent=0
    _
  %s8 = ssub.s32 1, %s6
  %s9 = scalar_select 0, %s8, %s6
  loop: start=0, step=1, limit=6
  $region2: #{gcmc_layer_forward.2} parent=0 // loop_pre_header
    _
  $region3: #{gcmc_layer_forward.2} parent=0 // loop_header
    %s11 = sphi 0, %s15
    %p12 = scmp.ge.s32.totalorder %s11, 6
    %s18 = sphi 0, %s37
    %s19 = sphi 0, %s33
    %s20 = sphi 0, %s29
    %s21 = sphi 0, %s18
    %s22 = sphi 0, %s19
    %s23 = sphi 0, %s20
    %s24 = sphi 0, %s21
    %s25 = sphi 0, %s22
    %s26 = sphi 0, %s23
    %s40 = sphi 0, %s42
    %s43 = sphi 0, %s40
    %s44 = sphi 0, %s43
    %s60 = sphi 0, %s44
    %s66 = sphi 0, %s68
    %s69 = sphi 0, %s66
    %s70 = sphi 0, %s69
    %s86 = sphi 0, %s70
    %s96 = sphi 0, %s98
    %s99 = sphi 0, %s96
    %s100 = sphi 0, %s99
    %s116 = sphi 0, %s100
    %s122 = sphi 0, %s124
    %s125 = sphi 0, %s122
    %s126 = sphi 0, %s125
    %s142 = sphi 0, %s126
    %s146 = sphi 0, %s146
    %s148 = sphi 0, %s146
    %s149 = sphi 0, %s148
    %s163 = sphi 0, %s149
    %s169 = sphi 0, %s171
    %s172 = sphi 0, %s169
    %s173 = sphi 0, %s172
    %s189 = sphi 0, %s173
  $region4: #{gcmc_layer_forward.2} parent=0 // loop_header_branch
    %14 = sbr.rel (%p12) target = $region8
  $region5: #{gcmc_layer_forward.2} parent=0 // loop_body
    %s16 = ssub.s32 %s11, 1
    %s17 = ssub.s32 %s11, 2
    %s27 = sadd.s32 1, %s20
    %p28 = scmp.ge.s32.totalorder %s27, 1
    %s29 = scalar_select %p28, 0, %s27
    %s30 = sadd.s32 1, %s19
    %s31 = scalar_select %p28, %s30, %s19
    %p32 = scmp.ge.s32.totalorder %s31, 4
    %s33 = scalar_select %p32, 0, %s31
    %s34 = sadd.s32 1, %s18
    %s35 = scalar_select %p32, %s34, %s18
    %p36 = scmp.ge.s32.totalorder %s35, 1
    %s37 = scalar_select %p36, 0, %s35
    %s38 = ssub.s32 %s20, %s29
    %p39 = scmp.eq.s32.totalorder %s38, 0
    %s41 = sadd.s32 %s40, 1
    %s42 = scalar_select %p39, %s40, %s41
    %p45 = pneg %p39
    %p46 = scmp.eq.s32.totalorder %s11, 3
    %p47 = por %p45, %p46
    %p48 = scmp.ne.s32.totalorder %s40, %s43
    %p49 = scmp.eq.s32.totalorder %s11, 0
    %p50 = por %p48, %p49
    %p51 = scmp.ne.s32.totalorder %s40, %s43
    %p52 = scmp.eq.s32.totalorder %s16, 3
    %p53 = por %p51, %p52
    %p54 = scmp.ne.s32.totalorder %s43, %s44
    %p55 = scmp.eq.s32.totalorder %s16, 0
    %p56 = por %p54, %p55
    %p57 = scmp.ne.s32.totalorder %s43, %s44
    %p58 = scmp.eq.s32.totalorder %s17, 3
    %p59 = por %p57, %p58
    %p61 = scmp.ne.s32.totalorder %s44, %s60
    %p62 = scmp.eq.s32.totalorder %s17, 0
    %p63 = por %p61, %p62
    %s64 = ssub.s32 %s19, %s33
    %p65 = scmp.eq.s32.totalorder %s64, 0
    %s67 = sadd.s32 %s66, 1
    %s68 = scalar_select %p65, %s66, %s67
    %p71 = pneg %p65
    %p72 = scmp.eq.s32.totalorder %s11, 3
    %p73 = por %p71, %p72
    %p74 = scmp.ne.s32.totalorder %s66, %s69
    %p75 = scmp.eq.s32.totalorder %s11, 0
    %p76 = por %p74, %p75
    %p77 = scmp.ne.s32.totalorder %s66, %s69
    %p78 = scmp.eq.s32.totalorder %s16, 3
    %p79 = por %p77, %p78
    %p80 = scmp.ne.s32.totalorder %s69, %s70
    %p81 = scmp.eq.s32.totalorder %s16, 0
    %p82 = por %p80, %p81
    %p83 = scmp.ne.s32.totalorder %s69, %s70
    %p84 = scmp.eq.s32.totalorder %s17, 3
    %p85 = por %p83, %p84
    %p87 = scmp.ne.s32.totalorder %s70, %s86
    %p88 = scmp.eq.s32.totalorder %s17, 0
    %p89 = por %p87, %p88
    %s90 = ssub.s32 %s19, %s33
    %s91 = ssub.s32 %s18, %s37
    %s92 = sor.u32 %s90, %s91
    %s93 = ssub.s32 %s20, %s29
    %s94 = sor.u32 %s92, %s93
    %p95 = scmp.eq.s32.totalorder %s94, 0
    %s97 = sadd.s32 %s96, 1
    %s98 = scalar_select %p95, %s96, %s97
    %p101 = pneg %p95
    %p102 = scmp.eq.s32.totalorder %s11, 3
    %p103 = por %p101, %p102
    %p104 = scmp.ne.s32.totalorder %s96, %s99
    %p105 = scmp.eq.s32.totalorder %s11, 0
    %p106 = por %p104, %p105
    %p107 = scmp.ne.s32.totalorder %s96, %s99
    %p108 = scmp.eq.s32.totalorder %s16, 3
    %p109 = por %p107, %p108
    %p110 = scmp.ne.s32.totalorder %s99, %s100
    %p111 = scmp.eq.s32.totalorder %s16, 0
    %p112 = por %p110, %p111
    %p113 = scmp.ne.s32.totalorder %s99, %s100
    %p114 = scmp.eq.s32.totalorder %s17, 3
    %p115 = por %p113, %p114
    %p117 = scmp.ne.s32.totalorder %s100, %s116
    %p118 = scmp.eq.s32.totalorder %s17, 0
    %p119 = por %p117, %p118
    %s120 = ssub.s32 %s18, %s37
    %p121 = scmp.eq.s32.totalorder %s120, 0
    %s123 = sadd.s32 %s122, 1
    %s124 = scalar_select %p121, %s122, %s123
    %p127 = pneg %p121
    %p128 = scmp.eq.s32.totalorder %s11, 3
    %p129 = por %p127, %p128
    %p130 = scmp.ne.s32.totalorder %s122, %s125
    %p131 = scmp.eq.s32.totalorder %s11, 0
    %p132 = por %p130, %p131
    %p133 = scmp.ne.s32.totalorder %s122, %s125
    %p134 = scmp.eq.s32.totalorder %s16, 3
    %p135 = por %p133, %p134
    %p136 = scmp.ne.s32.totalorder %s125, %s126
    %p137 = scmp.eq.s32.totalorder %s16, 0
    %p138 = por %p136, %p137
    %p139 = scmp.ne.s32.totalorder %s125, %s126
    %p140 = scmp.eq.s32.totalorder %s17, 3
    %p141 = por %p139, %p140
    %p143 = scmp.ne.s32.totalorder %s126, %s142
    %p144 = scmp.eq.s32.totalorder %s17, 0
    %p145 = por %p143, %p144
    %s147 = sadd.s32 %s146, 1
    %p150 = scmp.eq.s32.totalorder %s11, 3
    %p151 = scmp.ne.s32.totalorder %s146, %s148
    %p152 = scmp.eq.s32.totalorder %s11, 0
    %p153 = por %p151, %p152
    %p154 = scmp.ne.s32.totalorder %s146, %s148
    %p155 = scmp.eq.s32.totalorder %s16, 3
    %p156 = por %p154, %p155
    %p157 = scmp.ne.s32.totalorder %s148, %s149
    %p158 = scmp.eq.s32.totalorder %s16, 0
    %p159 = por %p157, %p158
    %p160 = scmp.ne.s32.totalorder %s148, %s149
    %p161 = scmp.eq.s32.totalorder %s17, 3
    %p162 = por %p160, %p161
    %p164 = scmp.ne.s32.totalorder %s149, %s163
    %p165 = scmp.eq.s32.totalorder %s17, 0
    %p166 = por %p164, %p165
    %s167 = ssub.s32 %s18, %s37
    %p168 = scmp.eq.s32.totalorder %s167, 0
    %s170 = sadd.s32 %s169, 1
    %s171 = scalar_select %p168, %s169, %s170
    %p174 = pneg %p168
    %p175 = scmp.eq.s32.totalorder %s11, 3
    %p176 = por %p174, %p175
    %p177 = scmp.ne.s32.totalorder %s169, %s172
    %p178 = scmp.eq.s32.totalorder %s11, 0
    %p179 = por %p177, %p178
    %p180 = scmp.ne.s32.totalorder %s169, %s172
    %p181 = scmp.eq.s32.totalorder %s16, 3
    %p182 = por %p180, %p181
    %p183 = scmp.ne.s32.totalorder %s172, %s173
    %p184 = scmp.eq.s32.totalorder %s16, 0
    %p185 = por %p183, %p184
    %p186 = scmp.ne.s32.totalorder %s172, %s173
    %p187 = scmp.eq.s32.totalorder %s17, 3
    %p188 = por %p186, %p187
    %p190 = scmp.ne.s32.totalorder %s173, %s189
    %p191 = scmp.eq.s32.totalorder %s17, 0
    %p192 = por %p190, %p191
    %p193 = scmp.le.s32.totalorder 1, %s11
    %p194 = scmp.lt.s32.totalorder %s11, 5
    %p195 = pnand %p193, %p194
    %p196 = pneg %p195
    // Predicated region
    $region9: #{gcmc_layer_forward.2} parent=5 // pred_check
      _
    $region10: #{gcmc_layer_forward.2} parent=5 // pred_check_branch
      %198 = sbr.rel (%p195) target = $region12
    $region11: #{gcmc_layer_forward.2} parent=5 // pred_region
      %s199 = ssub.s32 %s11, 1
      // Predicated region
      $region13: #{gcmc_layer_forward.2} parent=11 // pred_check
        %p200 = pneg %p56
      $region14: #{gcmc_layer_forward.2} parent=11 // pred_check_branch
        %202 = sbr.rel (%p200) target = $region16
      $region15: #{gcmc_layer_forward.2} parent=11 // pred_region
        %s203 = smul.u32 16, %s23
        %p204 = scmp.lt.s32.totalorder %s203, 15
        %s205 = scalar_select %p204, %s203, 15
        %s206 = smul.addr %s205, 8
        %s207 = scalar_lea.vmem %s0, %s206
        %s208 = smul.u32 16, %s23
      $region16: #{gcmc_layer_forward.2} parent=11 // pred_fallthru
        _
      // Predicated region
      $region17: #{gcmc_layer_forward.2} parent=11 // pred_check
        %p209 = pneg %p138
      $region18: #{gcmc_layer_forward.2} parent=11 // pred_check_branch
        %211 = sbr.rel (%p209) target = $region20
      $region19: #{gcmc_layer_forward.2} parent=11 // pred_region
        %s212 = smul.u32 5, %s21
        %p213 = scmp.lt.s32.totalorder %s212, 4
        %s214 = scalar_select %p213, %s212, 4
        %s215 = smul.addr %s214, 8
        %s216 = scalar_lea.vmem %s3, %s215
        %s217 = smul.u32 5, %s21
      $region20: #{gcmc_layer_forward.2} parent=11 // pred_fallthru
        _
      // Predicated region
      $region21: #{gcmc_layer_forward.2} parent=11 // pred_check
        %p218 = pneg %p159
      $region22: #{gcmc_layer_forward.2} parent=11 // pred_check_branch
        %220 = sbr.rel (%p218) target = $region24
      $region23: #{gcmc_layer_forward.2} parent=11 // pred_region
        _
      $region24: #{gcmc_layer_forward.2} parent=11 // pred_fallthru
        _
    $region12: #{gcmc_layer_forward.2} parent=5 // pred_fallthru
      _
    %p221 = scmp.lt.s32.totalorder %s11, 4
    // Predicated region
    $region25: #{gcmc_layer_forward.2} parent=5 // pred_check
      %p222 = pneg %p221
    $region26: #{gcmc_layer_forward.2} parent=5 // pred_check_branch
      %224 = sbr.rel (%p222) target = $region28
    $region27: #{gcmc_layer_forward.2} parent=5 // pred_region
      // Predicated region
      $region29: #{gcmc_layer_forward.2} parent=27 // pred_check
        %p225 = pneg %p76
      $region30: #{gcmc_layer_forward.2} parent=27 // pred_check_branch
        %227 = sbr.rel (%p225) target = $region32
      $region31: #{gcmc_layer_forward.2} parent=27 // pred_region
        %p228 = scmp.lt.s32.totalorder %s19, 3
        %s229 = scalar_select %p228, %s19, 3
        %s230 = smul.addr %s229, 2
        %s231 = smul.addr %s230, 8
        %s232 = scalar_lea.vmem %s1, %s231
      $region32: #{gcmc_layer_forward.2} parent=27 // pred_fallthru
        _
      // Predicated region
      $region33: #{gcmc_layer_forward.2} parent=27 // pred_check
        %p233 = pneg %p106
      $region34: #{gcmc_layer_forward.2} parent=27 // pred_check_branch
        %235 = sbr.rel (%p233) target = $region36
      $region35: #{gcmc_layer_forward.2} parent=27 // pred_region
        %s236 = smul.u32 5, %s18
        %p237 = scmp.lt.s32.totalorder %s19, 3
        %s238 = scalar_select %p237, %s19, 3
        %p239 = scmp.lt.s32.totalorder %s236, 4
        %s240 = scalar_select %p239, %s236, 4
        %p241 = scmp.lt.s32.totalorder %s20, 0
        %s242 = scalar_select %p241, %s20, 0
        %s243 = sadd.s32 %s242, %s240
        %s244 = smul.addr %s238, 5
        %s245 = sadd.s32 %s243, %s244
        %s246 = smul.addr %s245, 4
        %s247 = scalar_lea.vmem %s2, %s246
        %s248 = smul.u32 5, %s18
      $region36: #{gcmc_layer_forward.2} parent=27 // pred_fallthru
        _
    $region28: #{gcmc_layer_forward.2} parent=5 // pred_fallthru
      _
    %p249 = scmp.le.s32.totalorder 1, %s11
    %p250 = scmp.lt.s32.totalorder %s11, 5
    %p251 = pnand %p249, %p250
    %p252 = pneg %p251
    // Predicated region
    $region37: #{gcmc_layer_forward.2} parent=5 // pred_check
      _
    $region38: #{gcmc_layer_forward.2} parent=5 // pred_check_branch
      %254 = sbr.rel (%p251) target = $region40
    $region39: #{gcmc_layer_forward.2} parent=5 // pred_region
      %s255 = ssub.s32 %s11, 1
      %s256 = smul.u32 16, %s23
      %p257 = scmp.lt.s32.totalorder %s256, 15
      %s258 = scalar_select %p257, %s256, 15
      %s259 = smul.addr %s258, 8
      %s260 = scalar_lea.vmem %s0, %s259
      %p261 = pneg %p56
      %p262 = pneg %p53
      %p263 = scmp.lt.s32.totalorder %s22, 3
      %s264 = scalar_select %p263, %s22, 3
      %s265 = smul.addr %s264, 2
      %s266 = smul.addr %s265, 8
      %s267 = scalar_lea.vmem %s1, %s266
      %p268 = pneg %p82
      %p269 = pneg %p79
      %s270 = smul.u32 5, %s21
      %p271 = scmp.lt.s32.totalorder %s22, 3
      %s272 = scalar_select %p271, %s22, 3
      %p273 = scmp.lt.s32.totalorder %s270, 4
      %s274 = scalar_select %p273, %s270, 4
      %p275 = scmp.lt.s32.totalorder %s23, 0
      %s276 = scalar_select %p275, %s23, 0
      %s277 = sadd.s32 %s276, %s274
      %s278 = smul.addr %s272, 5
      %s279 = sadd.s32 %s277, %s278
      %s280 = smul.addr %s279, 4
      %s281 = scalar_lea.vmem %s2, %s280
      %p282 = pneg %p112
      %p283 = pneg %p109
      %s284 = smul.u32 5, %s21
      %p285 = scmp.lt.s32.totalorder %s284, 4
      %s286 = scalar_select %p285, %s284, 4
      %s287 = smul.addr %s286, 8
      %s288 = scalar_lea.vmem %s3, %s287
      %p289 = pneg %p138
      %p290 = pneg %p135
      %p291 = pneg %p159
      %p292 = pneg %p156
      %p293 = pneg %p185
      %p294 = pneg %p182
      %s295 = smul.u32 5, %s21
      %p296 = scmp.lt.s32.totalorder %s295, 4
      %s297 = scalar_select %p296, %s295, 4
      %s298 = smul.addr %s297, 8
      %s299 = scalar_lea.vmem %s5, %s298
      %s300 = smul.u32 16, %s23
      %p301 = scmp.lt.s32.totalorder %s300, 15
      %s302 = scalar_select %p301, %s300, 15
      %s303 = smul.addr %s302, 8
      %s304 = scalar_lea.vmem %s0, %s303
      %s305 = smul.u32 16, %s23
      %p306 = scmp.lt.s32.totalorder %s22, 3
      %s307 = scalar_select %p306, %s22, 3
      %s308 = smul.addr %s307, 2
      %s309 = smul.addr %s308, 8
      %s310 = scalar_lea.vmem %s1, %s309
      %s311 = smul.u32 5, %s21
      %p312 = scmp.lt.s32.totalorder %s22, 3
      %s313 = scalar_select %p312, %s22, 3
      %p314 = scmp.lt.s32.totalorder %s311, 4
      %s315 = scalar_select %p314, %s311, 4
      %p316 = scmp.lt.s32.totalorder %s23, 0
      %s317 = scalar_select %p316, %s23, 0
      %s318 = sadd.s32 %s317, %s315
      %s319 = smul.addr %s313, 5
      %s320 = sadd.s32 %s318, %s319
      %s321 = smul.addr %s320, 4
      %s322 = scalar_lea.vmem %s2, %s321
      %s323 = smul.u32 5, %s21
      %s324 = smul.u32 5, %s21
      %p325 = scmp.lt.s32.totalorder %s324, 4
      %s326 = scalar_select %p325, %s324, 4
      %s327 = smul.addr %s326, 8
      %s328 = scalar_lea.vmem %s3, %s327
      %s329 = smul.u32 5, %s21
      %s330 = smul.u32 5, %s21
      %p331 = scmp.lt.s32.totalorder %s330, 4
      %s332 = scalar_select %p331, %s330, 4
      %s333 = smul.addr %s332, 8
      %s334 = scalar_lea.vmem %s5, %s333
      %s335 = smul.u32 5, %s21
      %p337 = scmp.eq.s32.totalorder %s22, 0
      %p338 = scmp.eq.s32.totalorder %s23, 0
      %p339 = pnand %p337, %p338
      %p340 = pneg %p339
      // Predicated region
      $region41: #{gcmc_layer_forward.2} parent=39 // pred_check
        _
      $region42: #{gcmc_layer_forward.2} parent=39 // pred_check_branch
        %342 = sbr.rel (%p339) target = $region44
      $region43: #{gcmc_layer_forward.2} parent=39 // pred_region
        %343 = vst [vmem:[%s334] sm:$0xff] 0.0
        %344 = vst [vmem:[%s334 + $0x8] sm:$0xff] 0.0
        %345 = vst [vmem:[%s334 + $0x10] sm:$0xff] 0.0
        %346 = vst [vmem:[%s334 + $0x18] sm:$0xff] 0.0
        %347 = vst [vmem:[%s334 + $0x20] sm:$0xff] 0.0
      $region44: #{gcmc_layer_forward.2} parent=39 // pred_fallthru
        _
      %v348 = vld [vmem:[%s304] sm:$0xff]
      %v349 = vld [vmem:[%s304 + $0x8] sm:$0xff]
      %v350 = vld [vmem:[%s304 + $0x10] sm:$0xff]
      %v351 = vld [vmem:[%s304 + $0x18] sm:$0xff]
      %v352 = vld [vmem:[%s304 + $0x20] sm:$0xff]
      %v353 = vld [vmem:[%s304 + $0x28] sm:$0xff]
      %v354 = vld [vmem:[%s304 + $0x30] sm:$0xff]
      %v355 = vld [vmem:[%s304 + $0x38] sm:$0xff]
      %v356 = vld [vmem:[%s304 + $0x40] sm:$0xff]
      %v357 = vld [vmem:[%s304 + $0x48] sm:$0xff]
      %v358 = vld [vmem:[%s304 + $0x50] sm:$0xff]
      %v359 = vld [vmem:[%s304 + $0x58] sm:$0xff]
      %v360 = vld [vmem:[%s304 + $0x60] sm:$0xff]
      %v361 = vld [vmem:[%s304 + $0x68] sm:$0xff]
      %v362 = vld [vmem:[%s304 + $0x70] sm:$0xff]
      %v363 = vld [vmem:[%s304 + $0x78] sm:$0xff]
      %v364 = vld [vmem:[%s310] sm:$0xff]
      %v365 = vld [vmem:[%s310 + $0x8] sm:$0xff]
      %vm366 = vcmask 130048
      %v368 = vsel %vm366, %v348, 0
      %v371 = vsel %vm366, %v349, 0
      %v374 = vsel %vm366, %v350, 0
      %v377 = vsel %vm366, %v351, 0
      %v380 = vsel %vm366, %v352, 0
      %v383 = vsel %vm366, %v353, 0
      %v386 = vsel %vm366, %v354, 0
      %v389 = vsel %vm366, %v355, 0
      %v392 = vsel %vm366, %v356, 0
      %v395 = vsel %vm366, %v357, 0
      %v398 = vsel %vm366, %v358, 0
      %v401 = vsel %vm366, %v359, 0
      %v404 = vsel %vm366, %v360, 0
      %v407 = vsel %vm366, %v361, 0
      %v410 = vsel %vm366, %v362, 0
      %v413 = vsel %vm366, %v363, 0
      %415 = vmatprep.subr.mxu0 0.0
      %416 = vmatpush1.msra.mxu0 %v364
      %417 = vmatprep.subr.mxu0 0.0
      %418 = vmatpush1.msra.mxu0 %v365
      %419 = vmatprep.subr.mxu0 0.0
      %420 = vmatpush1.msra.mxu0 0.0
      %421 = vmatprep.subr.mxu0 0.0
      %422 = vmatpush1.msra.mxu0 0.0
      %423 = vmatprep.subr.mxu0 0.0
      %424 = vmatpush1.msra.mxu0 0.0
      %425 = vmatprep.subr.mxu0 0.0
      %426 = vmatpush1.msra.mxu0 0.0
      %427 = vmatprep.subr.mxu0 0.0
      %428 = vmatpush1.msra.mxu0 0.0
      %429 = vmatprep.subr.mxu0 0.0
      %430 = vmatpush1.msra.mxu0 0.0
      %431 = vmatprep.subr.mxu0 0.0
      %432 = vmatpush1.msra.mxu0 0.0
      %433 = vmatprep.subr.mxu0 0.0
      %434 = vmatpush1.msra.mxu0 0.0
      %435 = vmatprep.subr.mxu0 0.0
      %436 = vmatpush1.msra.mxu0 0.0
      %437 = vmatprep.subr.mxu0 0.0
      %438 = vmatpush1.msra.mxu0 0.0
      %439 = vmatprep.subr.mxu0 0.0
      %440 = vmatpush1.msra.mxu0 0.0
      %441 = vmatprep.subr.mxu0 0.0
      %442 = vmatpush1.msra.mxu0 0.0
      %443 = vmatprep.subr.mxu0 0.0
      %444 = vmatpush1.msra.mxu0 0.0
      %445 = vmatprep.subr.mxu0 0.0
      %446 = vmatpush1.msra.mxu0 0.0
      %447 = vmatprep.subr.mxu0 0.0
      %448 = vmatpush1.msra.mxu0 0.0
      %449 = vmatprep.subr.mxu0 0.0
      %450 = vmatpush1.msra.mxu0 0.0
      %451 = vmatprep.subr.mxu0 0.0
      %452 = vmatpush1.msra.mxu0 0.0
      %453 = vmatprep.subr.mxu0 0.0
      %454 = vmatpush1.msra.mxu0 0.0
      %455 = vmatprep.subr.mxu0 0.0
      %456 = vmatpush1.msra.mxu0 0.0
      %457 = vmatprep.subr.mxu0 0.0
      %458 = vmatpush1.msra.mxu0 0.0
      %459 = vmatprep.subr.mxu0 0.0
      %460 = vmatpush1.msra.mxu0 0.0
      %461 = vmatprep.subr.mxu0 0.0
      %462 = vmatpush1.msra.mxu0 0.0
      %463 = vmatprep.subr.mxu0 0.0
      %464 = vmatpush1.msra.mxu0 0.0
      %465 = vmatprep.subr.mxu0 0.0
      %466 = vmatpush1.msra.mxu0 0.0
      %467 = vmatprep.subr.mxu0 0.0
      %468 = vmatpush1.msra.mxu0 0.0
      %469 = vmatprep.subr.mxu0 0.0
      %470 = vmatpush1.msra.mxu0 0.0
      %471 = vmatprep.subr.mxu0 0.0
      %472 = vmatpush1.msra.mxu0 0.0
      %473 = vmatprep.subr.mxu0 0.0
      %474 = vmatpush1.msra.mxu0 0.0
      %475 = vmatprep.subr.mxu0 0.0
      %476 = vmatpush1.msra.mxu0 0.0
      %477 = vmatprep.subr.mxu0 0.0
      %478 = vmatpush1.msra.mxu0 0.0
      %479 = vmatprep.mubr.f32.mxu0 0.0
      %480 = vmatmul.mubr.f32.gmra.mrb[0].mxu0 %v368
      %v481 = vpop.f32.mrb[0].mxu0
      %v482 = vadd.f32 0.0, %v481
      %v483 = vpop.f32.mrb[0].mxu0
      %484 = vmatprep.mubr.f32.mxu0 0.0
      %485 = vmatmul.mubr.f32.gmra.mrb[0].mxu0 %v371
      %v486 = vpop.f32.mrb[0].mxu0
      %v487 = vadd.f32 0.0, %v486
      %v488 = vpop.f32.mrb[0].mxu0
      %489 = vmatprep.mubr.f32.mxu0 0.0
      %490 = vmatmul.mubr.f32.gmra.mrb[0].mxu0 %v374
      %v491 = vpop.f32.mrb[0].mxu0
      %v492 = vadd.f32 0.0, %v491
      %v493 = vpop.f32.mrb[0].mxu0
      %494 = vmatprep.mubr.f32.mxu0 0.0
      %495 = vmatmul.mubr.f32.gmra.mrb[0].mxu0 %v377
      %v496 = vpop.f32.mrb[0].mxu0
      %v497 = vadd.f32 0.0, %v496
      %v498 = vpop.f32.mrb[0].mxu0
      %499 = vmatprep.mubr.f32.mxu0 0.0
      %500 = vmatmul.mubr.f32.gmra.mrb[0].mxu0 %v380
      %v501 = vpop.f32.mrb[0].mxu0
      %v502 = vadd.f32 0.0, %v501
      %v503 = vpop.f32.mrb[0].mxu0
      %504 = vmatprep.mubr.f32.mxu0 0.0
      %505 = vmatmul.mubr.f32.gmra.mrb[0].mxu0 %v383
      %v506 = vpop.f32.mrb[0].mxu0
      %v507 = vadd.f32 0.0, %v506
      %v508 = vpop.f32.mrb[0].mxu0
      %509 = vmatprep.mubr.f32.mxu0 0.0
      %510 = vmatmul.mubr.f32.gmra.mrb[0].mxu0 %v386
      %v511 = vpop.f32.mrb[0].mxu0
      %v512 = vadd.f32 0.0, %v511
      %v513 = vpop.f32.mrb[0].mxu0
      %514 = vmatprep.mubr.f32.mxu0 0.0
      %515 = vmatmul.mubr.f32.gmra.mrb[0].mxu0 %v389
      %v516 = vpop.f32.mrb[0].mxu0
      %v517 = vadd.f32 0.0, %v516
      %v518 = vpop.f32.mrb[0].mxu0
      %519 = vmatprep.mubr.f32.mxu0 0.0
      %520 = vmatmul.mubr.f32.gmra.mrb[0].mxu0 %v392
      %v521 = vpop.f32.mrb[0].mxu0
      %v522 = vadd.f32 0.0, %v521
      %v523 = vpop.f32.mrb[0].mxu0
      %524 = vmatprep.mubr.f32.mxu0 0.0
      %525 = vmatmul.mubr.f32.gmra.mrb[0].mxu0 %v395
      %v526 = vpop.f32.mrb[0].mxu0
      %v527 = vadd.f32 0.0, %v526
      %v528 = vpop.f32.mrb[0].mxu0
      %529 = vmatprep.mubr.f32.mxu0 0.0
      %530 = vmatmul.mubr.f32.gmra.mrb[0].mxu0 %v398
      %v531 = vpop.f32.mrb[0].mxu0
      %v532 = vadd.f32 0.0, %v531
      %v533 = vpop.f32.mrb[0].mxu0
      %534 = vmatprep.mubr.f32.mxu0 0.0
      %535 = vmatmul.mubr.f32.gmra.mrb[0].mxu0 %v401
      %v536 = vpop.f32.mrb[0].mxu0
      %v537 = vadd.f32 0.0, %v536
      %v538 = vpop.f32.mrb[0].mxu0
      %539 = vmatprep.mubr.f32.mxu0 0.0
      %540 = vmatmul.mubr.f32.gmra.mrb[0].mxu0 %v404
      %v541 = vpop.f32.mrb[0].mxu0
      %v542 = vadd.f32 0.0, %v541
      %v543 = vpop.f32.mrb[0].mxu0
      %544 = vmatprep.mubr.f32.mxu0 0.0
      %545 = vmatmul.mubr.f32.gmra.mrb[0].mxu0 %v407
      %v546 = vpop.f32.mrb[0].mxu0
      %v547 = vadd.f32 0.0, %v546
      %v548 = vpop.f32.mrb[0].mxu0
      %549 = vmatprep.mubr.f32.mxu0 0.0
      %550 = vmatmul.mubr.f32.gmra.mrb[0].mxu0 %v410
      %v551 = vpop.f32.mrb[0].mxu0
      %v552 = vadd.f32 0.0, %v551
      %v553 = vpop.f32.mrb[0].mxu0
      %554 = vmatprep.mubr.f32.mxu0 0.0
      %555 = vmatmul.mubr.f32.gmra.mrb[0].mxu0 %v413
      %v556 = vpop.f32.mrb[0].mxu0
      %v557 = vadd.f32 0.0, %v556
      %v558 = vpop.f32.mrb[0].mxu0
      %559 = vdwg.mxu0
      %v560 = vld [vmem:[%s334] sm:$0xff]
      %v561 = vld [vmem:[%s334 + $0x8] sm:$0xff]
      %v562 = vld [vmem:[%s334 + $0x10] sm:$0xff]
      %v563 = vld [vmem:[%s334 + $0x18] sm:$0xff]
      %v564 = vld [vmem:[%s334 + $0x20] sm:$0xff]
      %v565 = vld [vmem:[%s322] sm:$0xf]
      %v566 = vld [vmem:[%s322 + $0x4] sm:$0xf]
      %v567 = vld [vmem:[%s322 + $0x8] sm:$0xf]
      %v568 = vld [vmem:[%s322 + $0xc] sm:$0xf]
      %v569 = vld [vmem:[%s322 + $0x10] sm:$0xf]
      %v570 = vpack.c.bf16 %v487, %v482
      %v571 = vpack.c.bf16 %v497, %v492
      %v572 = vpack.c.bf16 %v507, %v502
      %v573 = vpack.c.bf16 %v517, %v512
      %v574 = vpack.c.bf16 %v527, %v522
      %v575 = vpack.c.bf16 %v537, %v532
      %v576 = vpack.c.bf16 %v547, %v542
      %v577 = vpack.c.bf16 %v557, %v552
      %v583 = vunpack.c.l.b16 %v565
      %v584 = vunpack.c.l.b16 %v566
      %v585 = vunpack.c.l.b16 %v567
      %v586 = vunpack.c.l.b16 %v568
      %v587 = vunpack.c.l.b16 %v569
      %v588 = vpack.c.b16 %v584, %v583
      %v589 = vpack.c.b16 %v586, %v585
      %v590 = vpack.c.b16 %v587, %v587
      %594 = vmatprep.subr.bf16.mxu0 0
      %595 = vmatpush1.bf16.msra.mxu0 %v570
      %596 = vmatprep.subr.bf16.mxu0 0
      %597 = vmatpush1.bf16.msra.mxu0 %v571
      %598 = vmatprep.subr.bf16.mxu0 0
      %599 = vmatpush1.bf16.msra.mxu0 %v572
      %600 = vmatprep.subr.bf16.mxu0 0
      %601 = vmatpush1.bf16.msra.mxu0 %v573
      %602 = vmatprep.subr.bf16.mxu0 0
      %603 = vmatpush1.bf16.msra.mxu0 %v574
      %604 = vmatprep.subr.bf16.mxu0 0
      %605 = vmatpush1.bf16.msra.mxu0 %v575
      %606 = vmatprep.subr.bf16.mxu0 0
      %607 = vmatpush1.bf16.msra.mxu0 %v576
      %608 = vmatprep.subr.bf16.mxu0 0
      %609 = vmatpush1.bf16.msra.mxu0 %v577
      %610 = vmatprep.subr.bf16.mxu0 0
      %611 = vmatpush1.bf16.msra.mxu0 0
      %612 = vmatprep.subr.bf16.mxu0 0
      %613 = vmatpush1.bf16.msra.mxu0 0
      %614 = vmatprep.subr.bf16.mxu0 0
      %615 = vmatpush1.bf16.msra.mxu0 0
      %616 = vmatprep.subr.bf16.mxu0 0
      %617 = vmatpush1.bf16.msra.mxu0 0
      %618 = vmatprep.subr.bf16.mxu0 0
      %619 = vmatpush1.bf16.msra.mxu0 0
      %620 = vmatprep.subr.bf16.mxu0 0
      %621 = vmatpush1.bf16.msra.mxu0 0
      %622 = vmatprep.subr.bf16.mxu0 0
      %623 = vmatpush1.bf16.msra.mxu0 0
      %624 = vmatprep.subr.bf16.mxu0 0
      %625 = vmatpush1.bf16.msra.mxu0 0
      %626 = vmatprep.mubr.bf16.mxu0 0
      %627 = vmatmul.mubr.bf16.gmra.mrb[0].mxu0 %v588
      %v628 = vpop.f32.mrb[0].mxu0
      %v629 = vadd.f32 0.0, %v628
      %v630 = vpop.f32.mrb[0].mxu0
      %v631 = vpop.f32.mrb[0].mxu0
      %v632 = vadd.f32 0.0, %v631
      %v633 = vpop.f32.mrb[0].mxu0
      %634 = vmatprep.mubr.bf16.mxu0 0
      %635 = vmatmul.mubr.bf16.gmra.mrb[0].mxu0 %v589
      %v636 = vpop.f32.mrb[0].mxu0
      %v637 = vadd.f32 0.0, %v636
      %v638 = vpop.f32.mrb[0].mxu0
      %v639 = vpop.f32.mrb[0].mxu0
      %v640 = vadd.f32 0.0, %v639
      %v641 = vpop.f32.mrb[0].mxu0
      %642 = vmatprep.mubr.bf16.mxu0 0
      %643 = vmatmul.mubr.bf16.gmra.mrb[0].mxu0 %v590
      %v644 = vpop.f32.mrb[0].mxu0
      %v645 = vadd.f32 0.0, %v644
      %v646 = vpop.f32.mrb[0].mxu0
      %v647 = vpop.f32.mrb[0].mxu0
      %v648 = vpop.f32.mrb[0].mxu0
      %649 = vdwg.mxu0
      %v650 = vadd.f32 %v560, %v629
      %v651 = vadd.f32 %v561, %v632
      %v652 = vadd.f32 %v562, %v637
      %v653 = vadd.f32 %v563, %v640
      %v654 = vadd.f32 %v564, %v645
      %655 = vst [vmem:[%s334] sm:$0xff] %v650
      %656 = vst [vmem:[%s334 + $0x8] sm:$0xff] %v651
      %657 = vst [vmem:[%s334 + $0x10] sm:$0xff] %v652
      %658 = vst [vmem:[%s334 + $0x18] sm:$0xff] %v653
      %659 = vst [vmem:[%s334 + $0x20] sm:$0xff] %v654
      %p660 = scmp.eq.s32.totalorder %s22, 3
      %p661 = pnand %p660, %p338
      %p662 = pneg %p661
      // Predicated region
      $region45: #{gcmc_layer_forward.2} parent=39 // pred_check
        _
      $region46: #{gcmc_layer_forward.2} parent=39 // pred_check_branch
        %664 = sbr.rel (%p661) target = $region48
      $region47: #{gcmc_layer_forward.2} parent=39 // pred_region
        %v665 = vld [vmem:[%s334] sm:$0xff]
        %v666 = vld [vmem:[%s334 + $0x8] sm:$0xff]
        %v667 = vld [vmem:[%s334 + $0x10] sm:$0xff]
        %v668 = vld [vmem:[%s334 + $0x18] sm:$0xff]
        %v669 = vld [vmem:[%s334 + $0x20] sm:$0xff]
        %v670 = vld [vmem:[%s328] sm:$0xff]
        %v671 = vld [vmem:[%s328 + $0x8] sm:$0xff]
        %v672 = vld [vmem:[%s328 + $0x10] sm:$0xff]
        %v673 = vld [vmem:[%s328 + $0x18] sm:$0xff]
        %v674 = vld [vmem:[%s328 + $0x20] sm:$0xff]
        %676 = vset.pattern.permute.xlu0 0
        %677 = vperm.xlu0 %676, %v670
        %v678 = vpop.permute.xlu0 %677
        %681 = vset.pattern.permute.xlu0 0
        %682 = vperm.xlu0 %681, %v671
        %v683 = vpop.permute.xlu0 %682
        %686 = vset.pattern.permute.xlu0 0
        %687 = vperm.xlu0 %686, %v672
        %v688 = vpop.permute.xlu0 %687
        %691 = vset.pattern.permute.xlu0 0
        %692 = vperm.xlu0 %691, %v673
        %v693 = vpop.permute.xlu0 %692
        %696 = vset.pattern.permute.xlu0 0
        %697 = vperm.xlu0 %696, %v674
        %v698 = vpop.permute.xlu0 %697
        %v700 = vmul.f32 %v665, %v678
        %v701 = vmul.f32 %v666, %v683
        %v702 = vmul.f32 %v667, %v688
        %v703 = vmul.f32 %v668, %v693
        %v704 = vmul.f32 %v669, %v698
        %v705 = vld [vmem:[%s4] sm:$0x1]
        %v707 = vlaneseq
        %v708 = vshrl.u32 %v707, 7
        %v709 = vsub.s32 0, %v708
        %v710 = vrot.slane %v705, %v709
        %v712 = vadd.f32 %v700, %v710
        %v713 = vadd.f32 %v701, %v710
        %v714 = vadd.f32 %v702, %v710
        %v715 = vadd.f32 %v703, %v710
        %v716 = vadd.f32 %v704, %v710
        %717 = vst [vmem:[%s334] sm:$0xff] %v712
        %718 = vst [vmem:[%s334 + $0x8] sm:$0xff] %v713
        %719 = vst [vmem:[%s334 + $0x10] sm:$0xff] %v714
        %720 = vst [vmem:[%s334 + $0x18] sm:$0xff] %v715
        %721 = vst [vmem:[%s334 + $0x20] sm:$0xff] %v716
      $region48: #{gcmc_layer_forward.2} parent=39 // pred_fallthru
        _
      %s722 = smul.u32 5, %s21
      %p723 = scmp.lt.s32.totalorder %s722, 4
      %s724 = scalar_select %p723, %s722, 4
      %s725 = smul.addr %s724, 8
      %s726 = scalar_lea.vmem %s5, %s725
      // Predicated region
      $region49: #{gcmc_layer_forward.2} parent=39 // pred_check
        %p727 = pneg %p182
      $region50: #{gcmc_layer_forward.2} parent=39 // pred_check_branch
        %729 = sbr.rel (%p727) target = $region52
      $region51: #{gcmc_layer_forward.2} parent=39 // pred_region
        %s730 = smul.u32 5, %s21
      $region52: #{gcmc_layer_forward.2} parent=39 // pred_fallthru
        _
      // Predicated region
      $region53: #{gcmc_layer_forward.2} parent=39 // pred_check
        %p731 = pneg %p182
      $region54: #{gcmc_layer_forward.2} parent=39 // pred_check_branch
        %733 = sbr.rel (%p731) target = $region56
      $region55: #{gcmc_layer_forward.2} parent=39 // pred_region
        %s734 = smul.u32 5, %s21
        %p735 = scmp.lt.s32.totalorder %s734, 4
        %s736 = scalar_select %p735, %s734, 4
        %s737 = smul.addr %s736, 8
        %s738 = scalar_lea.vmem %s5, %s737
      $region56: #{gcmc_layer_forward.2} parent=39 // pred_fallthru
        _
    $region40: #{gcmc_layer_forward.2} parent=5 // pred_fallthru
      _
    %p739 = scmp.le.s32.totalorder 2, %s11
    // Predicated region
    $region57: #{gcmc_layer_forward.2} parent=5 // pred_check
      %p740 = pneg %p739
    $region58: #{gcmc_layer_forward.2} parent=5 // pred_check_branch
      %742 = sbr.rel (%p740) target = $region60
    $region59: #{gcmc_layer_forward.2} parent=5 // pred_region
      %s743 = ssub.s32 %s11, 2
    $region60: #{gcmc_layer_forward.2} parent=5 // pred_fallthru
      _
  $region6: #{gcmc_layer_forward.2} parent=0 // loop_footer
    %s15 = sadd.s32 1, %s11
  $region7: #{gcmc_layer_forward.2} parent=0 // loop_footer_branch
    %10 = sbr.rel target = $region3
  $region8: #{gcmc_layer_forward.2} parent=0 // loop_exit
    _

// kernel: gcmc_layer_forward.3
$region0: #{gcmc_layer_forward.3}
  #allocation0 [shape = 'u32[]', space=smem, size = 0x4, offset = 0x4, fixed_abs, tag = 'smem constant byte address 0x4 - core index']
  #allocation1 [shape = 'u32[144,128]{1,0:T(1,128)}', space=vmem, size = 0x12000, scoped, tag = 'internal scratch']
  %s0 = inlined_call_operand.vmem [shape: f32[128,24], index: 0, kind: input, shape index: {}]
  %s1 = inlined_call_operand.vmem [shape: f32[4,24,128], index: 1, kind: input, shape index: {}]
  %s2 = inlined_call_operand.vmem [shape: bf16[4,48,128], index: 2, kind: input, shape index: {}]
  %s3 = inlined_call_operand.vmem [shape: f32[48,1], index: 3, kind: input, shape index: {}]
  %s4 = inlined_call_operand.vmem [shape: f32[1,128], index: 4, kind: input, shape index: {}]
  %s5 = inlined_call_operand.vmem [shape: f32[48,128], index: 5, kind: output, shape index: {}]
  %s6 = sld [smem:[#allocation0]]
  $region61: #{gcmc_layer_forward.3} parent=0
    _
  %s8 = ssub.s32 1, %s6
  %s9 = scalar_select 0, %s8, %s6
  loop: start=0, step=1, limit=6
  $region2: #{gcmc_layer_forward.3} parent=0 // loop_pre_header
    _
  $region3: #{gcmc_layer_forward.3} parent=0 // loop_header
    %s11 = sphi 0, %s15
    %p12 = scmp.ge.s32.totalorder %s11, 6
    %s18 = sphi 0, %s37
    %s19 = sphi 0, %s33
    %s20 = sphi 0, %s29
    %s21 = sphi 0, %s18
    %s22 = sphi 0, %s19
    %s23 = sphi 0, %s20
    %s24 = sphi 0, %s21
    %s25 = sphi 0, %s22
    %s26 = sphi 0, %s23
    %s40 = sphi 0, %s42
    %s43 = sphi 0, %s40
    %s44 = sphi 0, %s43
    %s60 = sphi 0, %s44
    %s66 = sphi 0, %s68
    %s69 = sphi 0, %s66
    %s70 = sphi 0, %s69
    %s86 = sphi 0, %s70
    %s96 = sphi 0, %s98
    %s99 = sphi 0, %s96
    %s100 = sphi 0, %s99
    %s116 = sphi 0, %s100
    %s122 = sphi 0, %s124
    %s125 = sphi 0, %s122
    %s126 = sphi 0, %s125
    %s142 = sphi 0, %s126
    %s146 = sphi 0, %s146
    %s148 = sphi 0, %s146
    %s149 = sphi 0, %s148
    %s163 = sphi 0, %s149
    %s169 = sphi 0, %s171
    %s172 = sphi 0, %s169
    %s173 = sphi 0, %s172
    %s189 = sphi 0, %s173
  $region4: #{gcmc_layer_forward.3} parent=0 // loop_header_branch
    %14 = sbr.rel (%p12) target = $region8
  $region5: #{gcmc_layer_forward.3} parent=0 // loop_body
    %s16 = ssub.s32 %s11, 1
    %s17 = ssub.s32 %s11, 2
    %s27 = sadd.s32 1, %s20
    %p28 = scmp.ge.s32.totalorder %s27, 1
    %s29 = scalar_select %p28, 0, %s27
    %s30 = sadd.s32 1, %s19
    %s31 = scalar_select %p28, %s30, %s19
    %p32 = scmp.ge.s32.totalorder %s31, 4
    %s33 = scalar_select %p32, 0, %s31
    %s34 = sadd.s32 1, %s18
    %s35 = scalar_select %p32, %s34, %s18
    %p36 = scmp.ge.s32.totalorder %s35, 1
    %s37 = scalar_select %p36, 0, %s35
    %s38 = ssub.s32 %s20, %s29
    %p39 = scmp.eq.s32.totalorder %s38, 0
    %s41 = sadd.s32 %s40, 1
    %s42 = scalar_select %p39, %s40, %s41
    %p45 = pneg %p39
    %p46 = scmp.eq.s32.totalorder %s11, 3
    %p47 = por %p45, %p46
    %p48 = scmp.ne.s32.totalorder %s40, %s43
    %p49 = scmp.eq.s32.totalorder %s11, 0
    %p50 = por %p48, %p49
    %p51 = scmp.ne.s32.totalorder %s40, %s43
    %p52 = scmp.eq.s32.totalorder %s16, 3
    %p53 = por %p51, %p52
    %p54 = scmp.ne.s32.totalorder %s43, %s44
    %p55 = scmp.eq.s32.totalorder %s16, 0
    %p56 = por %p54, %p55
    %p57 = scmp.ne.s32.totalorder %s43, %s44
    %p58 = scmp.eq.s32.totalorder %s17, 3
    %p59 = por %p57, %p58
    %p61 = scmp.ne.s32.totalorder %s44, %s60
    %p62 = scmp.eq.s32.totalorder %s17, 0
    %p63 = por %p61, %p62
    %s64 = ssub.s32 %s19, %s33
    %p65 = scmp.eq.s32.totalorder %s64, 0
    %s67 = sadd.s32 %s66, 1
    %s68 = scalar_select %p65, %s66, %s67
    %p71 = pneg %p65
    %p72 = scmp.eq.s32.totalorder %s11, 3
    %p73 = por %p71, %p72
    %p74 = scmp.ne.s32.totalorder %s66, %s69
    %p75 = scmp.eq.s32.totalorder %s11, 0
    %p76 = por %p74, %p75
    %p77 = scmp.ne.s32.totalorder %s66, %s69
    %p78 = scmp.eq.s32.totalorder %s16, 3
    %p79 = por %p77, %p78
    %p80 = scmp.ne.s32.totalorder %s69, %s70
    %p81 = scmp.eq.s32.totalorder %s16, 0
    %p82 = por %p80, %p81
    %p83 = scmp.ne.s32.totalorder %s69, %s70
    %p84 = scmp.eq.s32.totalorder %s17, 3
    %p85 = por %p83, %p84
    %p87 = scmp.ne.s32.totalorder %s70, %s86
    %p88 = scmp.eq.s32.totalorder %s17, 0
    %p89 = por %p87, %p88
    %s90 = ssub.s32 %s19, %s33
    %s91 = ssub.s32 %s18, %s37
    %s92 = sor.u32 %s90, %s91
    %s93 = ssub.s32 %s20, %s29
    %s94 = sor.u32 %s92, %s93
    %p95 = scmp.eq.s32.totalorder %s94, 0
    %s97 = sadd.s32 %s96, 1
    %s98 = scalar_select %p95, %s96, %s97
    %p101 = pneg %p95
    %p102 = scmp.eq.s32.totalorder %s11, 3
    %p103 = por %p101, %p102
    %p104 = scmp.ne.s32.totalorder %s96, %s99
    %p105 = scmp.eq.s32.totalorder %s11, 0
    %p106 = por %p104, %p105
    %p107 = scmp.ne.s32.totalorder %s96, %s99
    %p108 = scmp.eq.s32.totalorder %s16, 3
    %p109 = por %p107, %p108
    %p110 = scmp.ne.s32.totalorder %s99, %s100
    %p111 = scmp.eq.s32.totalorder %s16, 0
    %p112 = por %p110, %p111
    %p113 = scmp.ne.s32.totalorder %s99, %s100
    %p114 = scmp.eq.s32.totalorder %s17, 3
    %p115 = por %p113, %p114
    %p117 = scmp.ne.s32.totalorder %s100, %s116
    %p118 = scmp.eq.s32.totalorder %s17, 0
    %p119 = por %p117, %p118
    %s120 = ssub.s32 %s18, %s37
    %p121 = scmp.eq.s32.totalorder %s120, 0
    %s123 = sadd.s32 %s122, 1
    %s124 = scalar_select %p121, %s122, %s123
    %p127 = pneg %p121
    %p128 = scmp.eq.s32.totalorder %s11, 3
    %p129 = por %p127, %p128
    %p130 = scmp.ne.s32.totalorder %s122, %s125
    %p131 = scmp.eq.s32.totalorder %s11, 0
    %p132 = por %p130, %p131
    %p133 = scmp.ne.s32.totalorder %s122, %s125
    %p134 = scmp.eq.s32.totalorder %s16, 3
    %p135 = por %p133, %p134
    %p136 = scmp.ne.s32.totalorder %s125, %s126
    %p137 = scmp.eq.s32.totalorder %s16, 0
    %p138 = por %p136, %p137
    %p139 = scmp.ne.s32.totalorder %s125, %s126
    %p140 = scmp.eq.s32.totalorder %s17, 3
    %p141 = por %p139, %p140
    %p143 = scmp.ne.s32.totalorder %s126, %s142
    %p144 = scmp.eq.s32.totalorder %s17, 0
    %p145 = por %p143, %p144
    %s147 = sadd.s32 %s146, 1
    %p150 = scmp.eq.s32.totalorder %s11, 3
    %p151 = scmp.ne.s32.totalorder %s146, %s148
    %p152 = scmp.eq.s32.totalorder %s11, 0
    %p153 = por %p151, %p152
    %p154 = scmp.ne.s32.totalorder %s146, %s148
    %p155 = scmp.eq.s32.totalorder %s16, 3
    %p156 = por %p154, %p155
    %p157 = scmp.ne.s32.totalorder %s148, %s149
    %p158 = scmp.eq.s32.totalorder %s16, 0
    %p159 = por %p157, %p158
    %p160 = scmp.ne.s32.totalorder %s148, %s149
    %p161 = scmp.eq.s32.totalorder %s17, 3
    %p162 = por %p160, %p161
    %p164 = scmp.ne.s32.totalorder %s149, %s163
    %p165 = scmp.eq.s32.totalorder %s17, 0
    %p166 = por %p164, %p165
    %s167 = ssub.s32 %s18, %s37
    %p168 = scmp.eq.s32.totalorder %s167, 0
    %s170 = sadd.s32 %s169, 1
    %s171 = scalar_select %p168, %s169, %s170
    %p174 = pneg %p168
    %p175 = scmp.eq.s32.totalorder %s11, 3
    %p176 = por %p174, %p175
    %p177 = scmp.ne.s32.totalorder %s169, %s172
    %p178 = scmp.eq.s32.totalorder %s11, 0
    %p179 = por %p177, %p178
    %p180 = scmp.ne.s32.totalorder %s169, %s172
    %p181 = scmp.eq.s32.totalorder %s16, 3
    %p182 = por %p180, %p181
    %p183 = scmp.ne.s32.totalorder %s172, %s173
    %p184 = scmp.eq.s32.totalorder %s16, 0
    %p185 = por %p183, %p184
    %p186 = scmp.ne.s32.totalorder %s172, %s173
    %p187 = scmp.eq.s32.totalorder %s17, 3
    %p188 = por %p186, %p187
    %p190 = scmp.ne.s32.totalorder %s173, %s189
    %p191 = scmp.eq.s32.totalorder %s17, 0
    %p192 = por %p190, %p191
    %p193 = scmp.le.s32.totalorder 1, %s11
    %p194 = scmp.lt.s32.totalorder %s11, 5
    %p195 = pnand %p193, %p194
    %p196 = pneg %p195
    // Predicated region
    $region9: #{gcmc_layer_forward.3} parent=5 // pred_check
      _
    $region10: #{gcmc_layer_forward.3} parent=5 // pred_check_branch
      %198 = sbr.rel (%p195) target = $region12
    $region11: #{gcmc_layer_forward.3} parent=5 // pred_region
      %s199 = ssub.s32 %s11, 1
      // Predicated region
      $region13: #{gcmc_layer_forward.3} parent=11 // pred_check
        %p200 = pneg %p56
      $region14: #{gcmc_layer_forward.3} parent=11 // pred_check_branch
        %202 = sbr.rel (%p200) target = $region16
      $region15: #{gcmc_layer_forward.3} parent=11 // pred_region
        %s203 = smul.u32 16, %s23
        %p204 = scmp.lt.s32.totalorder %s203, 15
        %s205 = scalar_select %p204, %s203, 15
        %s206 = smul.addr %s205, 8
        %s207 = scalar_lea.vmem %s0, %s206
        %s208 = smul.u32 16, %s23
      $region16: #{gcmc_layer_forward.3} parent=11 // pred_fallthru
        _
      // Predicated region
      $region17: #{gcmc_layer_forward.3} parent=11 // pred_check
        %p209 = pneg %p138
      $region18: #{gcmc_layer_forward.3} parent=11 // pred_check_branch
        %211 = sbr.rel (%p209) target = $region20
      $region19: #{gcmc_layer_forward.3} parent=11 // pred_region
        %s212 = smul.u32 6, %s21
        %p213 = scmp.lt.s32.totalorder %s212, 5
        %s214 = scalar_select %p213, %s212, 5
        %s215 = smul.addr %s214, 8
        %s216 = scalar_lea.vmem %s3, %s215
        %s217 = smul.u32 6, %s21
      $region20: #{gcmc_layer_forward.3} parent=11 // pred_fallthru
        _
      // Predicated region
      $region21: #{gcmc_layer_forward.3} parent=11 // pred_check
        %p218 = pneg %p159
      $region22: #{gcmc_layer_forward.3} parent=11 // pred_check_branch
        %220 = sbr.rel (%p218) target = $region24
      $region23: #{gcmc_layer_forward.3} parent=11 // pred_region
        _
      $region24: #{gcmc_layer_forward.3} parent=11 // pred_fallthru
        _
    $region12: #{gcmc_layer_forward.3} parent=5 // pred_fallthru
      _
    %p221 = scmp.lt.s32.totalorder %s11, 4
    // Predicated region
    $region25: #{gcmc_layer_forward.3} parent=5 // pred_check
      %p222 = pneg %p221
    $region26: #{gcmc_layer_forward.3} parent=5 // pred_check_branch
      %224 = sbr.rel (%p222) target = $region28
    $region27: #{gcmc_layer_forward.3} parent=5 // pred_region
      // Predicated region
      $region29: #{gcmc_layer_forward.3} parent=27 // pred_check
        %p225 = pneg %p76
      $region30: #{gcmc_layer_forward.3} parent=27 // pred_check_branch
        %227 = sbr.rel (%p225) target = $region32
      $region31: #{gcmc_layer_forward.3} parent=27 // pred_region
        %p228 = scmp.lt.s32.totalorder %s19, 3
        %s229 = scalar_select %p228, %s19, 3
        %s230 = smul.addr %s229, 3
        %s231 = smul.addr %s230, 8
        %s232 = scalar_lea.vmem %s1, %s231
      $region32: #{gcmc_layer_forward.3} parent=27 // pred_fallthru
        _
      // Predicated region
      $region33: #{gcmc_layer_forward.3} parent=27 // pred_check
        %p233 = pneg %p106
      $region34: #{gcmc_layer_forward.3} parent=27 // pred_check_branch
        %235 = sbr.rel (%p233) target = $region36
      $region35: #{gcmc_layer_forward.3} parent=27 // pred_region
        %s236 = smul.u32 6, %s18
        %p237 = scmp.lt.s32.totalorder %s19, 3
        %s238 = scalar_select %p237, %s19, 3
        %p239 = scmp.lt.s32.totalorder %s236, 5
        %s240 = scalar_select %p239, %s236, 5
        %p241 = scmp.lt.s32.totalorder %s20, 0
        %s242 = scalar_select %p241, %s20, 0
        %s243 = sadd.s32 %s242, %s240
        %s244 = smul.addr %s238, 6
        %s245 = sadd.s32 %s243, %s244
        %s246 = smul.addr %s245, 4
        %s247 = scalar_lea.vmem %s2, %s246
        %s248 = smul.u32 6, %s18
      $region36: #{gcmc_layer_forward.3} parent=27 // pred_fallthru
        _
    $region28: #{gcmc_layer_forward.3} parent=5 // pred_fallthru
      _
    %p249 = scmp.le.s32.totalorder 1, %s11
    %p250 = scmp.lt.s32.totalorder %s11, 5
    %p251 = pnand %p249, %p250
    %p252 = pneg %p251
    // Predicated region
    $region37: #{gcmc_layer_forward.3} parent=5 // pred_check
      _
    $region38: #{gcmc_layer_forward.3} parent=5 // pred_check_branch
      %254 = sbr.rel (%p251) target = $region40
    $region39: #{gcmc_layer_forward.3} parent=5 // pred_region
      %s255 = ssub.s32 %s11, 1
      %s256 = smul.u32 16, %s23
      %p257 = scmp.lt.s32.totalorder %s256, 15
      %s258 = scalar_select %p257, %s256, 15
      %s259 = smul.addr %s258, 8
      %s260 = scalar_lea.vmem %s0, %s259
      %p261 = pneg %p56
      %p262 = pneg %p53
      %p263 = scmp.lt.s32.totalorder %s22, 3
      %s264 = scalar_select %p263, %s22, 3
      %s265 = smul.addr %s264, 3
      %s266 = smul.addr %s265, 8
      %s267 = scalar_lea.vmem %s1, %s266
      %p268 = pneg %p82
      %p269 = pneg %p79
      %s270 = smul.u32 6, %s21
      %p271 = scmp.lt.s32.totalorder %s22, 3
      %s272 = scalar_select %p271, %s22, 3
      %p273 = scmp.lt.s32.totalorder %s270, 5
      %s274 = scalar_select %p273, %s270, 5
      %p275 = scmp.lt.s32.totalorder %s23, 0
      %s276 = scalar_select %p275, %s23, 0
      %s277 = sadd.s32 %s276, %s274
      %s278 = smul.addr %s272, 6
      %s279 = sadd.s32 %s277, %s278
      %s280 = smul.addr %s279, 4
      %s281 = scalar_lea.vmem %s2, %s280
      %p282 = pneg %p112
      %p283 = pneg %p109
      %s284 = smul.u32 6, %s21
      %p285 = scmp.lt.s32.totalorder %s284, 5
      %s286 = scalar_select %p285, %s284, 5
      %s287 = smul.addr %s286, 8
      %s288 = scalar_lea.vmem %s3, %s287
      %p289 = pneg %p138
      %p290 = pneg %p135
      %p291 = pneg %p159
      %p292 = pneg %p156
      %p293 = pneg %p185
      %p294 = pneg %p182
      %s295 = smul.u32 6, %s21
      %p296 = scmp.lt.s32.totalorder %s295, 5
      %s297 = scalar_select %p296, %s295, 5
      %s298 = smul.addr %s297, 8
      %s299 = scalar_lea.vmem %s5, %s298
      %s300 = smul.u32 16, %s23
      %p301 = scmp.lt.s32.totalorder %s300, 15
      %s302 = scalar_select %p301, %s300, 15
      %s303 = smul.addr %s302, 8
      %s304 = scalar_lea.vmem %s0, %s303
      %s305 = smul.u32 16, %s23
      %p306 = scmp.lt.s32.totalorder %s22, 3
      %s307 = scalar_select %p306, %s22, 3
      %s308 = smul.addr %s307, 3
      %s309 = smul.addr %s308, 8
      %s310 = scalar_lea.vmem %s1, %s309
      %s311 = smul.u32 6, %s21
      %p312 = scmp.lt.s32.totalorder %s22, 3
      %s313 = scalar_select %p312, %s22, 3
      %p314 = scmp.lt.s32.totalorder %s311, 5
      %s315 = scalar_select %p314, %s311, 5
      %p316 = scmp.lt.s32.totalorder %s23, 0
      %s317 = scalar_select %p316, %s23, 0
      %s318 = sadd.s32 %s317, %s315
      %s319 = smul.addr %s313, 6
      %s320 = sadd.s32 %s318, %s319
      %s321 = smul.addr %s320, 4
      %s322 = scalar_lea.vmem %s2, %s321
      %s323 = smul.u32 6, %s21
      %s324 = smul.u32 6, %s21
      %p325 = scmp.lt.s32.totalorder %s324, 5
      %s326 = scalar_select %p325, %s324, 5
      %s327 = smul.addr %s326, 8
      %s328 = scalar_lea.vmem %s3, %s327
      %s329 = smul.u32 6, %s21
      %s330 = smul.u32 6, %s21
      %p331 = scmp.lt.s32.totalorder %s330, 5
      %s332 = scalar_select %p331, %s330, 5
      %s333 = smul.addr %s332, 8
      %s334 = scalar_lea.vmem %s5, %s333
      %s335 = smul.u32 6, %s21
      %p337 = scmp.eq.s32.totalorder %s22, 0
      %p338 = scmp.eq.s32.totalorder %s23, 0
      %p339 = pnand %p337, %p338
      %p340 = pneg %p339
      // Predicated region
      $region41: #{gcmc_layer_forward.3} parent=39 // pred_check
        _
      $region42: #{gcmc_layer_forward.3} parent=39 // pred_check_branch
        %342 = sbr.rel (%p339) target = $region44
      $region43: #{gcmc_layer_forward.3} parent=39 // pred_region
        %343 = vst [vmem:[%s334] sm:$0xff] 0.0
        %344 = vst [vmem:[%s334 + $0x8] sm:$0xff] 0.0
        %345 = vst [vmem:[%s334 + $0x10] sm:$0xff] 0.0
        %346 = vst [vmem:[%s334 + $0x18] sm:$0xff] 0.0
        %347 = vst [vmem:[%s334 + $0x20] sm:$0xff] 0.0
        %348 = vst [vmem:[%s334 + $0x28] sm:$0xff] 0.0
      $region44: #{gcmc_layer_forward.3} parent=39 // pred_fallthru
        _
      %v349 = vld [vmem:[%s304] sm:$0xff]
      %v350 = vld [vmem:[%s304 + $0x8] sm:$0xff]
      %v351 = vld [vmem:[%s304 + $0x10] sm:$0xff]
      %v352 = vld [vmem:[%s304 + $0x18] sm:$0xff]
      %v353 = vld [vmem:[%s304 + $0x20] sm:$0xff]
      %v354 = vld [vmem:[%s304 + $0x28] sm:$0xff]
      %v355 = vld [vmem:[%s304 + $0x30] sm:$0xff]
      %v356 = vld [vmem:[%s304 + $0x38] sm:$0xff]
      %v357 = vld [vmem:[%s304 + $0x40] sm:$0xff]
      %v358 = vld [vmem:[%s304 + $0x48] sm:$0xff]
      %v359 = vld [vmem:[%s304 + $0x50] sm:$0xff]
      %v360 = vld [vmem:[%s304 + $0x58] sm:$0xff]
      %v361 = vld [vmem:[%s304 + $0x60] sm:$0xff]
      %v362 = vld [vmem:[%s304 + $0x68] sm:$0xff]
      %v363 = vld [vmem:[%s304 + $0x70] sm:$0xff]
      %v364 = vld [vmem:[%s304 + $0x78] sm:$0xff]
      %v365 = vld [vmem:[%s310] sm:$0xff]
      %v366 = vld [vmem:[%s310 + $0x8] sm:$0xff]
      %v367 = vld [vmem:[%s310 + $0x10] sm:$0xff]
      %vm368 = vcmask 195584
      %v370 = vsel %vm368, %v349, 0
      %v373 = vsel %vm368, %v350, 0
      %v376 = vsel %vm368, %v351, 0
      %v379 = vsel %vm368, %v352, 0
      %v382 = vsel %vm368, %v353, 0
      %v385 = vsel %vm368, %v354, 0
      %v388 = vsel %vm368, %v355, 0
      %v391 = vsel %vm368, %v356, 0
      %v394 = vsel %vm368, %v357, 0
      %v397 = vsel %vm368, %v358, 0
      %v400 = vsel %vm368, %v359, 0
      %v403 = vsel %vm368, %v360, 0
      %v406 = vsel %vm368, %v361, 0
      %v409 = vsel %vm368, %v362, 0
      %v412 = vsel %vm368, %v363, 0
      %v415 = vsel %vm368, %v364, 0
      %417 = vmatprep.subr.mxu0 0.0
      %418 = vmatpush1.msra.mxu0 %v365
      %419 = vmatprep.subr.mxu0 0.0
      %420 = vmatpush1.msra.mxu0 %v366
      %421 = vmatprep.subr.mxu0 0.0
      %422 = vmatpush1.msra.mxu0 %v367
      %423 = vmatprep.subr.mxu0 0.0
      %424 = vmatpush1.msra.mxu0 0.0
      %425 = vmatprep.subr.mxu0 0.0
      %426 = vmatpush1.msra.mxu0 0.0
      %427 = vmatprep.subr.mxu0 0.0
      %428 = vmatpush1.msra.mxu0 0.0
      %429 = vmatprep.subr.mxu0 0.0
      %430 = vmatpush1.msra.mxu0 0.0
      %431 = vmatprep.subr.mxu0 0.0
      %432 = vmatpush1.msra.mxu0 0.0
      %433 = vmatprep.subr.mxu0 0.0
      %434 = vmatpush1.msra.mxu0 0.0
      %435 = vmatprep.subr.mxu0 0.0
      %436 = vmatpush1.msra.mxu0 0.0
      %437 = vmatprep.subr.mxu0 0.0
      %438 = vmatpush1.msra.mxu0 0.0
      %439 = vmatprep.subr.mxu0 0.0
      %440 = vmatpush1.msra.mxu0 0.0
      %441 = vmatprep.subr.mxu0 0.0
      %442 = vmatpush1.msra.mxu0 0.0
      %443 = vmatprep.subr.mxu0 0.0
      %444 = vmatpush1.msra.mxu0 0.0
      %445 = vmatprep.subr.mxu0 0.0
      %446 = vmatpush1.msra.mxu0 0.0
      %447 = vmatprep.subr.mxu0 0.0
      %448 = vmatpush1.msra.mxu0 0.0
      %449 = vmatprep.subr.mxu0 0.0
      %450 = vmatpush1.msra.mxu0 0.0
      %451 = vmatprep.subr.mxu0 0.0
      %452 = vmatpush1.msra.mxu0 0.0
      %453 = vmatprep.subr.mxu0 0.0
      %454 = vmatpush1.msra.mxu0 0.0
      %455 = vmatprep.subr.mxu0 0.0
      %456 = vmatpush1.msra.mxu0 0.0
      %457 = vmatprep.subr.mxu0 0.0
      %458 = vmatpush1.msra.mxu0 0.0
      %459 = vmatprep.subr.mxu0 0.0
      %460 = vmatpush1.msra.mxu0 0.0
      %461 = vmatprep.subr.mxu0 0.0
      %462 = vmatpush1.msra.mxu0 0.0
      %463 = vmatprep.subr.mxu0 0.0
      %464 = vmatpush1.msra.mxu0 0.0
      %465 = vmatprep.subr.mxu0 0.0
      %466 = vmatpush1.msra.mxu0 0.0
      %467 = vmatprep.subr.mxu0 0.0
      %468 = vmatpush1.msra.mxu0 0.0
      %469 = vmatprep.subr.mxu0 0.0
      %470 = vmatpush1.msra.mxu0 0.0
      %471 = vmatprep.subr.mxu0 0.0
      %472 = vmatpush1.msra.mxu0 0.0
      %473 = vmatprep.subr.mxu0 0.0
      %474 = vmatpush1.msra.mxu0 0.0
      %475 = vmatprep.subr.mxu0 0.0
      %476 = vmatpush1.msra.mxu0 0.0
      %477 = vmatprep.subr.mxu0 0.0
      %478 = vmatpush1.msra.mxu0 0.0
      %479 = vmatprep.subr.mxu0 0.0
      %480 = vmatpush1.msra.mxu0 0.0
      %481 = vmatprep.mubr.f32.mxu0 0.0
      %482 = vmatmul.mubr.f32.gmra.mrb[0].mxu0 %v370
      %v483 = vpop.f32.mrb[0].mxu0
      %v484 = vadd.f32 0.0, %v483
      %v485 = vpop.f32.mrb[0].mxu0
      %486 = vmatprep.mubr.f32.mxu0 0.0
      %487 = vmatmul.mubr.f32.gmra.mrb[0].mxu0 %v373
      %v488 = vpop.f32.mrb[0].mxu0
      %v489 = vadd.f32 0.0, %v488
      %v490 = vpop.f32.mrb[0].mxu0
      %491 = vmatprep.mubr.f32.mxu0 0.0
      %492 = vmatmul.mubr.f32.gmra.mrb[0].mxu0 %v376
      %v493 = vpop.f32.mrb[0].mxu0
      %v494 = vadd.f32 0.0, %v493
      %v495 = vpop.f32.mrb[0].mxu0
      %496 = vmatprep.mubr.f32.mxu0 0.0
      %497 = vmatmul.mubr.f32.gmra.mrb[0].mxu0 %v379
      %v498 = vpop.f32.mrb[0].mxu0
      %v499 = vadd.f32 0.0, %v498
      %v500 = vpop.f32.mrb[0].mxu0
      %501 = vmatprep.mubr.f32.mxu0 0.0
      %502 = vmatmul.mubr.f32.gmra.mrb[0].mxu0 %v382
      %v503 = vpop.f32.mrb[0].mxu0
      %v504 = vadd.f32 0.0, %v503
      %v505 = vpop.f32.mrb[0].mxu0
      %506 = vmatprep.mubr.f32.mxu0 0.0
      %507 = vmatmul.mubr.f32.gmra.mrb[0].mxu0 %v385
      %v508 = vpop.f32.mrb[0].mxu0
      %v509 = vadd.f32 0.0, %v508
      %v510 = vpop.f32.mrb[0].mxu0
      %511 = vmatprep.mubr.f32.mxu0 0.0
      %512 = vmatmul.mubr.f32.gmra.mrb[0].mxu0 %v388
      %v513 = vpop.f32.mrb[0].mxu0
      %v514 = vadd.f32 0.0, %v513
      %v515 = vpop.f32.mrb[0].mxu0
      %516 = vmatprep.mubr.f32.mxu0 0.0
      %517 = vmatmul.mubr.f32.gmra.mrb[0].mxu0 %v391
      %v518 = vpop.f32.mrb[0].mxu0
      %v519 = vadd.f32 0.0, %v518
      %v520 = vpop.f32.mrb[0].mxu0
      %521 = vmatprep.mubr.f32.mxu0 0.0
      %522 = vmatmul.mubr.f32.gmra.mrb[0].mxu0 %v394
      %v523 = vpop.f32.mrb[0].mxu0
      %v524 = vadd.f32 0.0, %v523
      %v525 = vpop.f32.mrb[0].mxu0
      %526 = vmatprep.mubr.f32.mxu0 0.0
      %527 = vmatmul.mubr.f32.gmra.mrb[0].mxu0 %v397
      %v528 = vpop.f32.mrb[0].mxu0
      %v529 = vadd.f32 0.0, %v528
      %v530 = vpop.f32.mrb[0].mxu0
      %531 = vmatprep.mubr.f32.mxu0 0.0
      %532 = vmatmul.mubr.f32.gmra.mrb[0].mxu0 %v400
      %v533 = vpop.f32.mrb[0].mxu0
      %v534 = vadd.f32 0.0, %v533
      %v535 = vpop.f32.mrb[0].mxu0
      %536 = vmatprep.mubr.f32.mxu0 0.0
      %537 = vmatmul.mubr.f32.gmra.mrb[0].mxu0 %v403
      %v538 = vpop.f32.mrb[0].mxu0
      %v539 = vadd.f32 0.0, %v538
      %v540 = vpop.f32.mrb[0].mxu0
      %541 = vmatprep.mubr.f32.mxu0 0.0
      %542 = vmatmul.mubr.f32.gmra.mrb[0].mxu0 %v406
      %v543 = vpop.f32.mrb[0].mxu0
      %v544 = vadd.f32 0.0, %v543
      %v545 = vpop.f32.mrb[0].mxu0
      %546 = vmatprep.mubr.f32.mxu0 0.0
      %547 = vmatmul.mubr.f32.gmra.mrb[0].mxu0 %v409
      %v548 = vpop.f32.mrb[0].mxu0
      %v549 = vadd.f32 0.0, %v548
      %v550 = vpop.f32.mrb[0].mxu0
      %551 = vmatprep.mubr.f32.mxu0 0.0
      %552 = vmatmul.mubr.f32.gmra.mrb[0].mxu0 %v412
      %v553 = vpop.f32.mrb[0].mxu0
      %v554 = vadd.f32 0.0, %v553
      %v555 = vpop.f32.mrb[0].mxu0
      %556 = vmatprep.mubr.f32.mxu0 0.0
      %557 = vmatmul.mubr.f32.gmra.mrb[0].mxu0 %v415
      %v558 = vpop.f32.mrb[0].mxu0
      %v559 = vadd.f32 0.0, %v558
      %v560 = vpop.f32.mrb[0].mxu0
      %561 = vdwg.mxu0
      %v562 = vld [vmem:[%s334] sm:$0xff]
      %v563 = vld [vmem:[%s334 + $0x8] sm:$0xff]
      %v564 = vld [vmem:[%s334 + $0x10] sm:$0xff]
      %v565 = vld [vmem:[%s334 + $0x18] sm:$0xff]
      %v566 = vld [vmem:[%s334 + $0x20] sm:$0xff]
      %v567 = vld [vmem:[%s334 + $0x28] sm:$0xff]
      %v568 = vld [vmem:[%s322] sm:$0xf]
      %v569 = vld [vmem:[%s322 + $0x4] sm:$0xf]
      %v570 = vld [vmem:[%s322 + $0x8] sm:$0xf]
      %v571 = vld [vmem:[%s322 + $0xc] sm:$0xf]
      %v572 = vld [vmem:[%s322 + $0x10] sm:$0xf]
      %v573 = vld [vmem:[%s322 + $0x14] sm:$0xf]
      %v574 = vpack.c.bf16 %v489, %v484
      %v575 = vpack.c.bf16 %v499, %v494
      %v576 = vpack.c.bf16 %v509, %v504
      %v577 = vpack.c.bf16 %v519, %v514
      %v578 = vpack.c.bf16 %v529, %v524
      %v579 = vpack.c.bf16 %v539, %v534
      %v580 = vpack.c.bf16 %v549, %v544
      %v581 = vpack.c.bf16 %v559, %v554
      %v588 = vunpack.c.l.b16 %v568
      %v589 = vunpack.c.l.b16 %v569
      %v590 = vunpack.c.l.b16 %v570
      %v591 = vunpack.c.l.b16 %v571
      %v592 = vunpack.c.l.b16 %v572
      %v593 = vunpack.c.l.b16 %v573
      %v594 = vpack.c.b16 %v589, %v588
      %v595 = vpack.c.b16 %v591, %v590
      %v596 = vpack.c.b16 %v593, %v592
      %600 = vmatprep.subr.bf16.mxu0 0
      %601 = vmatpush1.bf16.msra.mxu0 %v574
      %602 = vmatprep.subr.bf16.mxu0 0
      %603 = vmatpush1.bf16.msra.mxu0 %v575
      %604 = vmatprep.subr.bf16.mxu0 0
      %605 = vmatpush1.bf16.msra.mxu0 %v576
      %606 = vmatprep.subr.bf16.mxu0 0
      %607 = vmatpush1.bf16.msra.mxu0 %v577
      %608 = vmatprep.subr.bf16.mxu0 0
      %609 = vmatpush1.bf16.msra.mxu0 %v578
      %610 = vmatprep.subr.bf16.mxu0 0
      %611 = vmatpush1.bf16.msra.mxu0 %v579
      %612 = vmatprep.subr.bf16.mxu0 0
      %613 = vmatpush1.bf16.msra.mxu0 %v580
      %614 = vmatprep.subr.bf16.mxu0 0
      %615 = vmatpush1.bf16.msra.mxu0 %v581
      %616 = vmatprep.subr.bf16.mxu0 0
      %617 = vmatpush1.bf16.msra.mxu0 0
      %618 = vmatprep.subr.bf16.mxu0 0
      %619 = vmatpush1.bf16.msra.mxu0 0
      %620 = vmatprep.subr.bf16.mxu0 0
      %621 = vmatpush1.bf16.msra.mxu0 0
      %622 = vmatprep.subr.bf16.mxu0 0
      %623 = vmatpush1.bf16.msra.mxu0 0
      %624 = vmatprep.subr.bf16.mxu0 0
      %625 = vmatpush1.bf16.msra.mxu0 0
      %626 = vmatprep.subr.bf16.mxu0 0
      %627 = vmatpush1.bf16.msra.mxu0 0
      %628 = vmatprep.subr.bf16.mxu0 0
      %629 = vmatpush1.bf16.msra.mxu0 0
      %630 = vmatprep.subr.bf16.mxu0 0
      %631 = vmatpush1.bf16.msra.mxu0 0
      %632 = vmatprep.mubr.bf16.mxu0 0
      %633 = vmatmul.mubr.bf16.gmra.mrb[0].mxu0 %v594
      %v634 = vpop.f32.mrb[0].mxu0
      %v635 = vadd.f32 0.0, %v634
      %v636 = vpop.f32.mrb[0].mxu0
      %v637 = vpop.f32.mrb[0].mxu0
      %v638 = vadd.f32 0.0, %v637
      %v639 = vpop.f32.mrb[0].mxu0
      %640 = vmatprep.mubr.bf16.mxu0 0
      %641 = vmatmul.mubr.bf16.gmra.mrb[0].mxu0 %v595
      %v642 = vpop.f32.mrb[0].mxu0
      %v643 = vadd.f32 0.0, %v642
      %v644 = vpop.f32.mrb[0].mxu0
      %v645 = vpop.f32.mrb[0].mxu0
      %v646 = vadd.f32 0.0, %v645
      %v647 = vpop.f32.mrb[0].mxu0
      %648 = vmatprep.mubr.bf16.mxu0 0
      %649 = vmatmul.mubr.bf16.gmra.mrb[0].mxu0 %v596
      %v650 = vpop.f32.mrb[0].mxu0
      %v651 = vadd.f32 0.0, %v650
      %v652 = vpop.f32.mrb[0].mxu0
      %v653 = vpop.f32.mrb[0].mxu0
      %v654 = vadd.f32 0.0, %v653
      %v655 = vpop.f32.mrb[0].mxu0
      %656 = vdwg.mxu0
      %v657 = vadd.f32 %v562, %v635
      %v658 = vadd.f32 %v563, %v638
      %v659 = vadd.f32 %v564, %v643
      %v660 = vadd.f32 %v565, %v646
      %v661 = vadd.f32 %v566, %v651
      %v662 = vadd.f32 %v567, %v654
      %663 = vst [vmem:[%s334] sm:$0xff] %v657
      %664 = vst [vmem:[%s334 + $0x8] sm:$0xff] %v658
      %665 = vst [vmem:[%s334 + $0x10] sm:$0xff] %v659
      %666 = vst [vmem:[%s334 + $0x18] sm:$0xff] %v660
      %667 = vst [vmem:[%s334 + $0x20] sm:$0xff] %v661
      %668 = vst [vmem:[%s334 + $0x28] sm:$0xff] %v662
      %p669 = scmp.eq.s32.totalorder %s22, 3
      %p670 = pnand %p669, %p338
      %p671 = pneg %p670
      // Predicated region
      $region45: #{gcmc_layer_forward.3} parent=39 // pred_check
        _
      $region46: #{gcmc_layer_forward.3} parent=39 // pred_check_branch
        %673 = sbr.rel (%p670) target = $region48
      $region47: #{gcmc_layer_forward.3} parent=39 // pred_region
        %v674 = vld [vmem:[%s334] sm:$0xff]
        %v675 = vld [vmem:[%s334 + $0x8] sm:$0xff]
        %v676 = vld [vmem:[%s334 + $0x10] sm:$0xff]
        %v677 = vld [vmem:[%s334 + $0x18] sm:$0xff]
        %v678 = vld [vmem:[%s334 + $0x20] sm:$0xff]
        %v679 = vld [vmem:[%s334 + $0x28] sm:$0xff]
        %v680 = vld [vmem:[%s328] sm:$0xff]
        %v681 = vld [vmem:[%s328 + $0x8] sm:$0xff]
        %v682 = vld [vmem:[%s328 + $0x10] sm:$0xff]
        %v683 = vld [vmem:[%s328 + $0x18] sm:$0xff]
        %v684 = vld [vmem:[%s328 + $0x20] sm:$0xff]
        %v685 = vld [vmem:[%s328 + $0x28] sm:$0xff]
        %687 = vset.pattern.permute.xlu0 0
        %688 = vperm.xlu0 %687, %v680
        %v689 = vpop.permute.xlu0 %688
        %692 = vset.pattern.permute.xlu0 0
        %693 = vperm.xlu0 %692, %v681
        %v694 = vpop.permute.xlu0 %693
        %697 = vset.pattern.permute.xlu0 0
        %698 = vperm.xlu0 %697, %v682
        %v699 = vpop.permute.xlu0 %698
        %702 = vset.pattern.permute.xlu0 0
        %703 = vperm.xlu0 %702, %v683
        %v704 = vpop.permute.xlu0 %703
        %707 = vset.pattern.permute.xlu0 0
        %708 = vperm.xlu0 %707, %v684
        %v709 = vpop.permute.xlu0 %708
        %712 = vset.pattern.permute.xlu0 0
        %713 = vperm.xlu0 %712, %v685
        %v714 = vpop.permute.xlu0 %713
        %v716 = vmul.f32 %v674, %v689
        %v717 = vmul.f32 %v675, %v694
        %v718 = vmul.f32 %v676, %v699
        %v719 = vmul.f32 %v677, %v704
        %v720 = vmul.f32 %v678, %v709
        %v721 = vmul.f32 %v679, %v714
        %v722 = vld [vmem:[%s4] sm:$0x1]
        %v724 = vlaneseq
        %v725 = vshrl.u32 %v724, 7
        %v726 = vsub.s32 0, %v725
        %v727 = vrot.slane %v722, %v726
        %v729 = vadd.f32 %v716, %v727
        %v730 = vadd.f32 %v717, %v727
        %v731 = vadd.f32 %v718, %v727
        %v732 = vadd.f32 %v719, %v727
        %v733 = vadd.f32 %v720, %v727
        %v734 = vadd.f32 %v721, %v727
        %735 = vst [vmem:[%s334] sm:$0xff] %v729
        %736 = vst [vmem:[%s334 + $0x8] sm:$0xff] %v730
        %737 = vst [vmem:[%s334 + $0x10] sm:$0xff] %v731
        %738 = vst [vmem:[%s334 + $0x18] sm:$0xff] %v732
        %739 = vst [vmem:[%s334 + $0x20] sm:$0xff] %v733
        %740 = vst [vmem:[%s334 + $0x28] sm:$0xff] %v734
      $region48: #{gcmc_layer_forward.3} parent=39 // pred_fallthru
        _
      %s741 = smul.u32 6, %s21
      %p742 = scmp.lt.s32.totalorder %s741, 5
      %s743 = scalar_select %p742, %s741, 5
      %s744 = smul.addr %s743, 8
      %s745 = scalar_lea.vmem %s5, %s744
      // Predicated region
      $region49: #{gcmc_layer_forward.3} parent=39 // pred_check
        %p746 = pneg %p182
      $region50: #{gcmc_layer_forward.3} parent=39 // pred_check_branch
        %748 = sbr.rel (%p746) target = $region52
      $region51: #{gcmc_layer_forward.3} parent=39 // pred_region
        %s749 = smul.u32 6, %s21
      $region52: #{gcmc_layer_forward.3} parent=39 // pred_fallthru
        _
      // Predicated region
      $region53: #{gcmc_layer_forward.3} parent=39 // pred_check
        %p750 = pneg %p182
      $region54: #{gcmc_layer_forward.3} parent=39 // pred_check_branch
        %752 = sbr.rel (%p750) target = $region56
      $region55: #{gcmc_layer_forward.3} parent=39 // pred_region
        %s753 = smul.u32 6, %s21
        %p754 = scmp.lt.s32.totalorder %s753, 5
        %s755 = scalar_select %p754, %s753, 5
        %s756 = smul.addr %s755, 8
        %s757 = scalar_lea.vmem %s5, %s756
      $region56: #{gcmc_layer_forward.3} parent=39 // pred_fallthru
        _
    $region40: #{gcmc_layer_forward.3} parent=5 // pred_fallthru
      _
    %p758 = scmp.le.s32.totalorder 2, %s11
    // Predicated region
    $region57: #{gcmc_layer_forward.3} parent=5 // pred_check
      %p759 = pneg %p758
    $region58: #{gcmc_layer_forward.3} parent=5 // pred_check_branch
      %761 = sbr.rel (%p759) target = $region60
    $region59: #{gcmc_layer_forward.3} parent=5 // pred_region
      %s762 = ssub.s32 %s11, 2
    $region60: #{gcmc_layer_forward.3} parent=5 // pred_fallthru
      _
  $region6: #{gcmc_layer_forward.3} parent=0 // loop_footer
    %s15 = sadd.s32 1, %s11
  $region7: #{gcmc_layer_forward.3} parent=0 // loop_footer_branch
    %10 = sbr.rel target = $region3
  $region8: #{gcmc_layer_forward.3} parent=0 // loop_exit
    _

</llo_original>
